<compile_context>
chip_gen: v7x
topology: tpu7x:2x2x1
jax: 0.10.0
libtpu: 0.0.40
codegen_flags: <defaults>
</compile_context>

<pallas_src>
import jax
import jax.numpy as jnp
from jax import lax
from jax.experimental import pallas as pl
from jax.experimental.pallas import tpu as pltpu

INPUT_DIM = 12
HIDDEN_DIM = 64
MID_DIM = 512
OUTPUT_DIM = 1
MID_CHUNK = 256   # fc2/fc3 fusion chunk (128 may be marginally better on v5e)


def _round_up(x, m):
    return ((x + m - 1) // m) * m


def _num_tensorcores():
    """Best-effort TensorCores-per-device (2 on megacore parts: v4/v5p/v7x)."""
    try:
        kind = jax.devices()[0].device_kind.lower()
    except Exception:
        return 1
    return 2 if any(t in kind for t in ("v4", "v5p", "v7", "7x")) else 1


def mlp_kernel(x_ref, w1_ref, b1_ref, w2_ref, b2_ref, w3_ref, b3_ref,
               w4_ref, b4_ref, o_ref):
    tb = x_ref.shape[0]                  # batch tile (lane axis of activations)

    # fc1: (64, 12) x (tb, 12) contracted on dim 1 of both -> (64, tb), f32.
    # (== relu(W1 @ x^T + b1); the small x-block transpose is XLU work.)
    h1 = lax.dot_general(
        w1_ref[...], x_ref[...],
        dimension_numbers=(((1,), (1,)), ((), ())),
        preferred_element_type=jnp.float32)
    h1 = jnp.maximum(h1 + b1_ref[...], 0.0)                        # (64, tb)

    # fc2 + fc3 fused over MID_DIM chunks: never materialize (512, tb).
    cdt = w2_ref.dtype                   # bf16 (default) or f32 operands
    h1c = h1.astype(cdt)
    acc = jnp.zeros((HIDDEN_DIM, tb), jnp.float32)
    for c in range(MID_DIM // MID_CHUNK):                          # 2 static iters
        lo = c * MID_CHUNK
        w2_c = w2_ref[pl.ds(lo, MID_CHUNK), :]                     # (chunk, 64)
        b2_c = b2_ref[pl.ds(lo, MID_CHUNK), :]                     # (chunk, 1)
        h2_c = jnp.dot(w2_c, h1c, preferred_element_type=jnp.float32) + b2_c
        h2_c = jnp.maximum(h2_c, 0.0).astype(cdt)                  # (chunk, tb)
        w3_c = w3_ref[:, pl.ds(lo, MID_CHUNK)]                     # (64, chunk)
        acc = acc + jnp.dot(w3_c, h2_c, preferred_element_type=jnp.float32)
    h3 = jnp.maximum(acc + b3_ref[...], 0.0)                       # (64, tb)

    # fc4 (out_features == 1): VPU multiply + sublane reduce (no 1-row MXU).
    o = jnp.sum(h3 * w4_ref[...], axis=0, keepdims=True) + b4_ref[...]
    o_ref[...] = o.astype(o_ref.dtype)                             # (1, tb)


def diamond_price_predictor(x, params, *, tb=2048,
                            compute_dtype=jnp.bfloat16,
                            lane_major_output=False):
    """x: (B, 12) float. params: PyTorch-layout weights (out,in) / biases (out,).

    Returns (B, 1) float32, or the raw lane-major (1, B_pad) kernel output if
    lane_major_output=True (caller slices [:, :B]; saves a trailing XLA pass).
    compute_dtype: operand dtype for the heavy fc2/fc3 matmuls (accumulation
    is always f32); pass jnp.float32 for the bit-closest-to-reference path.
    """
    B, D = x.shape
    assert D == INPUT_DIM
    x = x.astype(jnp.float32)

    # Batch tile: multiple of 128 (lane width) so stores are unmasked, capped
    # at tb.  Only on megacore parts do we force >=2 grid steps so the
    # ("parallel",) batch grid shards across both TensorCores.
    tile_cap = max(128, _round_up(tb, 128))
    tile = min(tile_cap, max(128, _round_up(B, 128)))
    ncores = _num_tensorcores()
    if ncores > 1:
        tile = min(tile, max(128, _round_up(pl.cdiv(B, ncores), 128)))
    B_pad = _round_up(B, tile)
    n_tiles = B_pad // tile

    if B_pad != B:
        x = jnp.pad(x, ((0, B_pad - B), (0, 0)))   # padded rows sliced off below

    # Weight prep (one-time casts; fc2/fc3 operands in compute_dtype).
    w1 = params["w1"].astype(jnp.float32)                       # (64, 12)
    b1 = params["b1"].reshape(-1, 1).astype(jnp.float32)        # (64, 1)
    w2 = params["w2"].astype(compute_dtype)                     # (512, 64)
    b2 = params["b2"].reshape(-1, 1).astype(jnp.float32)        # (512, 1)
    w3 = params["w3"].astype(compute_dtype)                     # (64, 512)
    b3 = params["b3"].reshape(-1, 1).astype(jnp.float32)        # (64, 1)
    w4t = params["w4"].T.astype(jnp.float32)                    # (64, 1)
    b4 = params["b4"].reshape(-1, 1).astype(jnp.float32)        # (1, 1)

    # Weights/biases easily fit VMEM; constant index maps keep them resident
    # across grid steps.  (pl.Buffered(1) on them would shave ~0.5 MiB of
    # double buffers, but VMEM is nowhere near binding at these tile sizes.)
    full = lambda a: pl.BlockSpec(a.shape, lambda i: (0, 0))

    flops = 2 * B_pad * (INPUT_DIM * HIDDEN_DIM + HIDDEN_DIM * MID_DIM
                         + MID_DIM * HIDDEN_DIM + HIDDEN_DIM * OUTPUT_DIM)
    weight_bytes = sum(int(a.size) * a.dtype.itemsize
                       for a in (w1, b1, w2, b2, w3, b3, w4t, b4))
    bytes_accessed = 4 * B_pad * (INPUT_DIM + OUTPUT_DIM) + weight_bytes

    compiler_kwargs = dict(dimension_semantics=("parallel",))
    if tile > 4096:
        # Explicit VMEM budget for very large tiles (v7x: 64 MiB physical,
        # 32 MiB default scoped limit).  Dominant terms: f32 activations
        # (h1, acc, h3, one MID_CHUNK slab) + double-buffered x/out blocks.
        act_bytes = 4 * tile * (3 * HIDDEN_DIM + MID_CHUNK)
        io_bytes = 2 * 4 * tile * (128 + 8)  # x (12->128 lanes), out (1->8 sublanes)
        compiler_kwargs["vmem_limit_bytes"] = min(
            act_bytes + io_bytes + (4 << 20), 64 * 1024 * 1024)

    out = pl.pallas_call(
        mlp_kernel,
        out_shape=jax.ShapeDtypeStruct((1, B_pad), jnp.float32),
        grid_spec=pltpu.PrefetchScalarGridSpec(
            num_scalar_prefetch=0,
            grid=(n_tiles,),
            in_specs=[
                pl.BlockSpec((tile, INPUT_DIM), lambda i: (i, 0)),   # x tile
                full(w1), full(b1),
                full(w2), full(b2),
                full(w3), full(b3),
                full(w4t), full(b4),
            ],
            out_specs=pl.BlockSpec((1, tile), lambda i: (0, i)),
        ),
        compiler_params=pltpu.CompilerParams(**compiler_kwargs),
        cost_estimate=pl.CostEstimate(
            flops=flops, transcendentals=0, bytes_accessed=bytes_accessed),
    )(x, w1, b1, w2, b2, w3, b3, w4t, b4)

    if lane_major_output:
        return out                      # (1, B_pad); caller slices [:, :B]
    return out[0, :B].reshape(B, OUTPUT_DIM)


def init_params(key):
    """Deterministic init mimicking nn.Linear's U(-1/sqrt(fan_in), 1/sqrt(fan_in)).
    Weights stored PyTorch-style as (out_features, in_features), biases as (out,)."""
    dims = [(INPUT_DIM, HIDDEN_DIM), (HIDDEN_DIM, MID_DIM),
            (MID_DIM, HIDDEN_DIM), (HIDDEN_DIM, OUTPUT_DIM)]
    params = {}
    for idx, (fan_in, fan_out) in enumerate(dims, start=1):
        key, kw, kb = jax.random.split(key, 3)
        bound = 1.0 / (fan_in ** 0.5)
        params[f"w{idx}"] = jax.random.uniform(
            kw, (fan_out, fan_in), jnp.float32, minval=-bound, maxval=bound)
        params[f"b{idx}"] = jax.random.uniform(
            kb, (fan_out,), jnp.float32, minval=-bound, maxval=bound)
    return params


def reference_forward(x, params):
    h = jnp.maximum(x @ params["w1"].T + params["b1"], 0.0)
    h = jnp.maximum(h @ params["w2"].T + params["b2"], 0.0)
    h = jnp.maximum(h @ params["w3"].T + params["b3"], 0.0)
    return h @ params["w4"].T + params["b4"]


if __name__ == "__main__":
    key = jax.random.PRNGKey(0)
    key, kx = jax.random.split(key)

    batch = 16
    x = jax.random.normal(kx, (batch, INPUT_DIM), jnp.float32)
    params = init_params(key)

    ref = reference_forward(x, params)

    # Exact path (f32 operands everywhere): must match the f32 reference tightly.
    out_f32 = jax.block_until_ready(
        diamond_price_predictor(x, params, compute_dtype=jnp.float32))
    assert out_f32.shape == (batch, OUTPUT_DIM)
    assert jnp.allclose(out_f32, ref, atol=1e-4, rtol=1e-4), "f32 path mismatch"

    # Fast path (default: bf16 operands on fc2/fc3, f32 accumulation).
    out = jax.block_until_ready(diamond_price_predictor(x, params))
    assert out.shape == (batch, OUTPUT_DIM)
    rel_err = jnp.max(jnp.abs(out - ref)) / (jnp.max(jnp.abs(ref)) + 1e-6)
    assert rel_err < 5e-2, f"bf16 path relative error too large: {rel_err}"

    print("KERNEL_OK")
</pallas_src>

<mosaic_0001>
module attributes {stable_mosaic.version = 11 : i64} {
  func.func @mlp_kernel(%arg0: i32, %arg1: memref<128x12xf32, #tpu.memory_space<vmem>>, %arg2: memref<64x12xf32, #tpu.memory_space<vmem>>, %arg3: memref<64x1xf32, #tpu.memory_space<vmem>>, %arg4: memref<512x64xf32, #tpu.memory_space<vmem>>, %arg5: memref<512x1xf32, #tpu.memory_space<vmem>>, %arg6: memref<64x512xf32, #tpu.memory_space<vmem>>, %arg7: memref<64x1xf32, #tpu.memory_space<vmem>>, %arg8: memref<64x1xf32, #tpu.memory_space<vmem>>, %arg9: memref<1x1xf32, #tpu.memory_space<vmem>>, %arg10: memref<1x128xf32, #tpu.memory_space<vmem>>) attributes {dimension_semantics = [#tpu.dimension_semantics<parallel>], iteration_bounds = array<i64: 1>, scalar_prefetch = 0 : i64, scratch_operands = 0 : i64, tpu.core_type = #tpu.core_type<tc>, window_params = [{transform_indices = @transform_0, window_bounds = array<i64: 128, 12>}, {pipeline_mode = #tpu.pipeline_mode<synchronous>, transform_indices = @transform_1, window_bounds = array<i64: 64, 12>}, {pipeline_mode = #tpu.pipeline_mode<synchronous>, transform_indices = @transform_2, window_bounds = array<i64: 64, 1>}, {pipeline_mode = #tpu.pipeline_mode<synchronous>, transform_indices = @transform_3, window_bounds = array<i64: 512, 64>}, {pipeline_mode = #tpu.pipeline_mode<synchronous>, transform_indices = @transform_4, window_bounds = array<i64: 512, 1>}, {pipeline_mode = #tpu.pipeline_mode<synchronous>, transform_indices = @transform_5, window_bounds = array<i64: 64, 512>}, {pipeline_mode = #tpu.pipeline_mode<synchronous>, transform_indices = @transform_6, window_bounds = array<i64: 64, 1>}, {pipeline_mode = #tpu.pipeline_mode<synchronous>, transform_indices = @transform_7, window_bounds = array<i64: 64, 1>}, {pipeline_mode = #tpu.pipeline_mode<synchronous>, transform_indices = @transform_8, window_bounds = array<i64: 1, 1>}, {transform_indices = @transform_9, window_bounds = array<i64: 1, 128>}]} {
    %c0 = arith.constant 0 : index
    %c0_0 = arith.constant 0 : index
    %0 = vector.load %arg2[%c0, %c0_0] : memref<64x12xf32, #tpu.memory_space<vmem>>, vector<64x12xf32>
    %c0_1 = arith.constant 0 : index
    %c0_2 = arith.constant 0 : index
    %1 = vector.load %arg1[%c0_1, %c0_2] : memref<128x12xf32, #tpu.memory_space<vmem>>, vector<128x12xf32>
    %cst = arith.constant dense<0.000000e+00> : vector<64x128xf32>
    %2 = tpu.matmul %0, %1, %cst {dimension_numbers = #tpu.dot_dimension_numbers<[1], [1], [0], [0], [0, 0, 1, 0], [], []>} : vector<64x12xf32>, vector<128x12xf32>, vector<64x128xf32> -> vector<64x128xf32>
    %c0_3 = arith.constant 0 : index
    %c0_4 = arith.constant 0 : index
    %3 = vector.load %arg3[%c0_3, %c0_4] : memref<64x1xf32, #tpu.memory_space<vmem>>, vector<64x1xf32>
    %4 = vector.broadcast %3 : vector<64x1xf32> to vector<64x128xf32>
    %5 = arith.addf %2, %4 : vector<64x128xf32>
    %cst_5 = arith.constant 0.000000e+00 : f32
    %6 = vector.broadcast %cst_5 : f32 to vector<64x128xf32>
    %7 = arith.maximumf %5, %6 : vector<64x128xf32>
    %cst_6 = arith.constant 0.000000e+00 : f32
    %8 = vector.broadcast %cst_6 : f32 to vector<64x128xf32>
    %c0_7 = arith.constant 0 : index
    %c0_8 = arith.constant 0 : index
    %9 = vector.load %arg4[%c0_7, %c0_8] : memref<512x64xf32, #tpu.memory_space<vmem>>, vector<256x64xf32>
    %c0_9 = arith.constant 0 : index
    %c0_10 = arith.constant 0 : index
    %10 = vector.load %arg5[%c0_9, %c0_10] : memref<512x1xf32, #tpu.memory_space<vmem>>, vector<256x1xf32>
    %cst_11 = arith.constant dense<0.000000e+00> : vector<256x128xf32>
    %11 = tpu.matmul %9, %7, %cst_11 {dimension_numbers = #tpu.dot_dimension_numbers<[1], [0], [0], [1], [0, 0, 1, 1], [], []>} : vector<256x64xf32>, vector<64x128xf32>, vector<256x128xf32> -> vector<256x128xf32>
    %12 = vector.broadcast %10 : vector<256x1xf32> to vector<256x128xf32>
    %13 = arith.addf %11, %12 : vector<256x128xf32>
    %cst_12 = arith.constant 0.000000e+00 : f32
    %14 = vector.broadcast %cst_12 : f32 to vector<256x128xf32>
    %15 = arith.maximumf %13, %14 : vector<256x128xf32>
    %c0_13 = arith.constant 0 : index
    %c0_14 = arith.constant 0 : index
    %16 = vector.load %arg6[%c0_13, %c0_14] : memref<64x512xf32, #tpu.memory_space<vmem>>, vector<64x256xf32>
    %cst_15 = arith.constant dense<0.000000e+00> : vector<64x128xf32>
    %17 = tpu.matmul %16, %15, %cst_15 {dimension_numbers = #tpu.dot_dimension_numbers<[1], [0], [0], [1], [0, 0, 1, 1], [], []>} : vector<64x256xf32>, vector<256x128xf32>, vector<64x128xf32> -> vector<64x128xf32>
    %18 = arith.addf %8, %17 : vector<64x128xf32>
    %c256 = arith.constant 256 : index
    %c0_16 = arith.constant 0 : index
    %19 = vector.load %arg4[%c256, %c0_16] : memref<512x64xf32, #tpu.memory_space<vmem>>, vector<256x64xf32>
    %c256_17 = arith.constant 256 : index
    %c0_18 = arith.constant 0 : index
    %20 = vector.load %arg5[%c256_17, %c0_18] : memref<512x1xf32, #tpu.memory_space<vmem>>, vector<256x1xf32>
    %cst_19 = arith.constant dense<0.000000e+00> : vector<256x128xf32>
    %21 = tpu.matmul %19, %7, %cst_19 {dimension_numbers = #tpu.dot_dimension_numbers<[1], [0], [0], [1], [0, 0, 1, 1], [], []>} : vector<256x64xf32>, vector<64x128xf32>, vector<256x128xf32> -> vector<256x128xf32>
    %22 = vector.broadcast %20 : vector<256x1xf32> to vector<256x128xf32>
    %23 = arith.addf %21, %22 : vector<256x128xf32>
    %cst_20 = arith.constant 0.000000e+00 : f32
    %24 = vector.broadcast %cst_20 : f32 to vector<256x128xf32>
    %25 = arith.maximumf %23, %24 : vector<256x128xf32>
    %c0_21 = arith.constant 0 : index
    %c256_22 = arith.constant 256 : index
    %26 = vector.load %arg6[%c0_21, %c256_22] : memref<64x512xf32, #tpu.memory_space<vmem>>, vector<64x256xf32>
    %cst_23 = arith.constant dense<0.000000e+00> : vector<64x128xf32>
    %27 = tpu.matmul %26, %25, %cst_23 {dimension_numbers = #tpu.dot_dimension_numbers<[1], [0], [0], [1], [0, 0, 1, 1], [], []>} : vector<64x256xf32>, vector<256x128xf32>, vector<64x128xf32> -> vector<64x128xf32>
    %28 = arith.addf %18, %27 : vector<64x128xf32>
    %c0_24 = arith.constant 0 : index
    %c0_25 = arith.constant 0 : index
    %29 = vector.load %arg7[%c0_24, %c0_25] : memref<64x1xf32, #tpu.memory_space<vmem>>, vector<64x1xf32>
    %30 = vector.broadcast %29 : vector<64x1xf32> to vector<64x128xf32>
    %31 = arith.addf %28, %30 : vector<64x128xf32>
    %cst_26 = arith.constant 0.000000e+00 : f32
    %32 = vector.broadcast %cst_26 : f32 to vector<64x128xf32>
    %33 = arith.maximumf %31, %32 : vector<64x128xf32>
    %c0_27 = arith.constant 0 : index
    %c0_28 = arith.constant 0 : index
    %34 = vector.load %arg8[%c0_27, %c0_28] : memref<64x1xf32, #tpu.memory_space<vmem>>, vector<64x1xf32>
    %35 = vector.broadcast %34 : vector<64x1xf32> to vector<64x128xf32>
    %36 = arith.mulf %33, %35 : vector<64x128xf32>
    %cst_29 = arith.constant dense<0.000000e+00> : vector<128xf32>
    %37 = vector.multi_reduction <add>, %36, %cst_29 [0] : vector<64x128xf32> to vector<128xf32>
    %38 = vector.shape_cast %37 : vector<128xf32> to vector<1x128xf32>
    %c0_30 = arith.constant 0 : index
    %c0_31 = arith.constant 0 : index
    %39 = vector.load %arg9[%c0_30, %c0_31] : memref<1x1xf32, #tpu.memory_space<vmem>>, vector<1x1xf32>
    %40 = vector.broadcast %39 : vector<1x1xf32> to vector<1x128xf32>
    %41 = arith.addf %38, %40 : vector<1x128xf32>
    %c0_32 = arith.constant 0 : index
    %c0_33 = arith.constant 0 : index
    %42 = vector.load %arg10[%c0_32, %c0_33] : memref<1x128xf32, #tpu.memory_space<vmem>>, vector<1x128xf32>
    tpu.vector_store %arg10[%c0_32, %c0_33], %41 {strides = array<i32>} : memref<1x128xf32, #tpu.memory_space<vmem>>, vector<1x128xf32>,
    return
  }
  func.func @transform_0(%arg0: i32) -> (i32, i32) {
    %c0_i32 = arith.constant 0 : i32
    %c0_i32_0 = arith.constant 0 : i32
    return %arg0, %c0_i32 : i32, i32
  }
  func.func @transform_1(%arg0: i32) -> (i32, i32) {
    %c0_i32 = arith.constant 0 : i32
    %c0_i32_0 = arith.constant 0 : i32
    %c0_i32_1 = arith.constant 0 : i32
    return %c0_i32, %c0_i32_0 : i32, i32
  }
  func.func @transform_2(%arg0: i32) -> (i32, i32) {
    %c0_i32 = arith.constant 0 : i32
    %c0_i32_0 = arith.constant 0 : i32
    %c0_i32_1 = arith.constant 0 : i32
    return %c0_i32, %c0_i32_0 : i32, i32
  }
  func.func @transform_3(%arg0: i32) -> (i32, i32) {
    %c0_i32 = arith.constant 0 : i32
    %c0_i32_0 = arith.constant 0 : i32
    %c0_i32_1 = arith.constant 0 : i32
    return %c0_i32, %c0_i32_0 : i32, i32
  }
  func.func @transform_4(%arg0: i32) -> (i32, i32) {
    %c0_i32 = arith.constant 0 : i32
    %c0_i32_0 = arith.constant 0 : i32
    %c0_i32_1 = arith.constant 0 : i32
    return %c0_i32, %c0_i32_0 : i32, i32
  }
  func.func @transform_5(%arg0: i32) -> (i32, i32) {
    %c0_i32 = arith.constant 0 : i32
    %c0_i32_0 = arith.constant 0 : i32
    %c0_i32_1 = arith.constant 0 : i32
    return %c0_i32, %c0_i32_0 : i32, i32
  }
  func.func @transform_6(%arg0: i32) -> (i32, i32) {
    %c0_i32 = arith.constant 0 : i32
    %c0_i32_0 = arith.constant 0 : i32
    %c0_i32_1 = arith.constant 0 : i32
    return %c0_i32, %c0_i32_0 : i32, i32
  }
  func.func @transform_7(%arg0: i32) -> (i32, i32) {
    %c0_i32 = arith.constant 0 : i32
    %c0_i32_0 = arith.constant 0 : i32
    %c0_i32_1 = arith.constant 0 : i32
    return %c0_i32, %c0_i32_0 : i32, i32
  }
  func.func @transform_8(%arg0: i32) -> (i32, i32) {
    %c0_i32 = arith.constant 0 : i32
    %c0_i32_0 = arith.constant 0 : i32
    %c0_i32_1 = arith.constant 0 : i32
    return %c0_i32, %c0_i32_0 : i32, i32
  }
  func.func @transform_9(%arg0: i32) -> (i32, i32) {
    %c0_i32 = arith.constant 0 : i32
    %c0_i32_0 = arith.constant 0 : i32
    return %c0_i32, %arg0 : i32, i32
  }
}

</mosaic_0001>

<llo_original>
// kernel: tpu_custom_call.1
$region0: #{tpu_custom_call.1}
  #allocation0 [shape = 'u32[]', space=smem, size = 0x4, offset = 0x4, fixed_abs, tag = 'smem constant byte address 0x4 - core index']
  #allocation1 [shape = 'u32[144,128]{1,0:T(1,128)}', space=vmem, size = 0x12000, scoped, tag = 'internal scratch']
  #allocation2 [shape = 'f32[1,1]{1,0:T(1,128)S(1)}', space=vmem, size = 0x200, scoped, tag = 'scoped memory for tpu_custom_call.1']
  %s0 = inlined_call_operand.vmem [shape: f32[128,12], index: 0, kind: input, shape index: {}]
  %s1 = inlined_call_operand.vmem [shape: f32[64,12], index: 1, kind: input, shape index: {}]
  %s2 = inlined_call_operand.vmem [shape: f32[64,1], index: 2, kind: input, shape index: {}]
  %s3 = inlined_call_operand.vmem [shape: f32[512,64], index: 3, kind: input, shape index: {}]
  %s4 = inlined_call_operand.vmem [shape: f32[512,1], index: 4, kind: input, shape index: {}]
  %s5 = inlined_call_operand.vmem [shape: f32[64,512], index: 5, kind: input, shape index: {}]
  %s6 = inlined_call_operand.vmem [shape: f32[64,1], index: 6, kind: input, shape index: {}]
  %s7 = inlined_call_operand.vmem [shape: f32[64,1], index: 7, kind: input, shape index: {}]
  %s8 = inlined_call_operand.<no memory space> [shape: f32[1,1], index: 8, kind: input, shape index: {}]
  %s9 = inlined_call_operand.hbm [shape: f32[1,128], index: 9, kind: output, shape index: {}]
  %s10 = sld [smem:[#allocation0]]
  $region46: #{tpu_custom_call.1} parent=0
    _
  %s12 = ssub.s32 1, %s10
  %s13 = scalar_select 0, %s12, %s10
  %v14 = vstv %s8
  %15 = vst [vmem:[#allocation2] sm:$0x1] %v14
  $region1: #{tpu_custom_call.1} parent=0
    #allocation3 [shape = 'u8[512]{0}', space=vmem, size = 0x400, scoped, tag = 'output window, operand 0, single buffered']
    #allocation4 [shape = 's32[1]{0}', space=sflag, size = 0x4, scoped, tag = 'scoped memory for tpu_custom_call.1']
    %16 = vsyncpa [#allocation4], 0
    // Predicated region
    $region2: #{tpu_custom_call.1} parent=1 // pred_check
      _
    $region3: #{tpu_custom_call.1} parent=1 // pred_check_branch
      %18 = sbr.rel (0) target = $region5
    $region4: #{tpu_custom_call.1} parent=1 // pred_region
      _
    $region5: #{tpu_custom_call.1} parent=1 // pred_fallthru
      _
    // Predicated region
    $region6: #{tpu_custom_call.1} parent=1 // pred_check
      _
    $region7: #{tpu_custom_call.1} parent=1 // pred_check_branch
      %20 = sbr.rel (0) target = $region9
    $region8: #{tpu_custom_call.1} parent=1 // pred_region
      _
    $region9: #{tpu_custom_call.1} parent=1 // pred_fallthru
      _
    // Predicated region
    $region10: #{tpu_custom_call.1} parent=1 // pred_check
      _
    $region11: #{tpu_custom_call.1} parent=1 // pred_check_branch
      %22 = sbr.rel (0) target = $region13
    $region12: #{tpu_custom_call.1} parent=1 // pred_region
      _
    $region13: #{tpu_custom_call.1} parent=1 // pred_fallthru
      _
    // Predicated region
    $region14: #{tpu_custom_call.1} parent=1 // pred_check
      _
    $region15: #{tpu_custom_call.1} parent=1 // pred_check_branch
      %24 = sbr.rel (0) target = $region17
    $region16: #{tpu_custom_call.1} parent=1 // pred_region
      _
    $region17: #{tpu_custom_call.1} parent=1 // pred_fallthru
      _
    // Predicated region
    $region18: #{tpu_custom_call.1} parent=1 // pred_check
      _
    $region19: #{tpu_custom_call.1} parent=1 // pred_check_branch
      %26 = sbr.rel (0) target = $region21
    $region20: #{tpu_custom_call.1} parent=1 // pred_region
      _
    $region21: #{tpu_custom_call.1} parent=1 // pred_fallthru
      _
    // Predicated region
    $region22: #{tpu_custom_call.1} parent=1 // pred_check
      _
    $region23: #{tpu_custom_call.1} parent=1 // pred_check_branch
      %28 = sbr.rel (0) target = $region25
    $region24: #{tpu_custom_call.1} parent=1 // pred_region
      _
    $region25: #{tpu_custom_call.1} parent=1 // pred_fallthru
      _
    // Predicated region
    $region26: #{tpu_custom_call.1} parent=1 // pred_check
      _
    $region27: #{tpu_custom_call.1} parent=1 // pred_check_branch
      %30 = sbr.rel (0) target = $region29
    $region28: #{tpu_custom_call.1} parent=1 // pred_region
      _
    $region29: #{tpu_custom_call.1} parent=1 // pred_fallthru
      _
    // Predicated region
    $region30: #{tpu_custom_call.1} parent=1 // pred_check
      _
    $region31: #{tpu_custom_call.1} parent=1 // pred_check_branch
      %32 = sbr.rel (0) target = $region33
    $region32: #{tpu_custom_call.1} parent=1 // pred_region
      _
    $region33: #{tpu_custom_call.1} parent=1 // pred_fallthru
      _
    // Predicated region
    $region34: #{tpu_custom_call.1} parent=1 // pred_check
      _
    $region35: #{tpu_custom_call.1} parent=1 // pred_check_branch
      %34 = sbr.rel (0) target = $region37
    $region36: #{tpu_custom_call.1} parent=1 // pred_region
      _
    $region37: #{tpu_custom_call.1} parent=1 // pred_fallthru
      _
    %v35 = vld [vmem:[%s1] sm:$0xff]
    %v36 = vld [vmem:[%s1 + $0x8] sm:$0xff]
    %v37 = vld [vmem:[%s1 + $0x10] sm:$0xff]
    %v38 = vld [vmem:[%s1 + $0x18] sm:$0xff]
    %v39 = vld [vmem:[%s1 + $0x20] sm:$0xff]
    %v40 = vld [vmem:[%s1 + $0x28] sm:$0xff]
    %v41 = vld [vmem:[%s1 + $0x30] sm:$0xff]
    %v42 = vld [vmem:[%s1 + $0x38] sm:$0xff]
    %v43 = vld [vmem:[%s0] sm:$0xff]
    %v44 = vld [vmem:[%s0 + $0x8] sm:$0xff]
    %v45 = vld [vmem:[%s0 + $0x10] sm:$0xff]
    %v46 = vld [vmem:[%s0 + $0x18] sm:$0xff]
    %v47 = vld [vmem:[%s0 + $0x20] sm:$0xff]
    %v48 = vld [vmem:[%s0 + $0x28] sm:$0xff]
    %v49 = vld [vmem:[%s0 + $0x30] sm:$0xff]
    %v50 = vld [vmem:[%s0 + $0x38] sm:$0xff]
    %v51 = vld [vmem:[%s0 + $0x40] sm:$0xff]
    %v52 = vld [vmem:[%s0 + $0x48] sm:$0xff]
    %v53 = vld [vmem:[%s0 + $0x50] sm:$0xff]
    %v54 = vld [vmem:[%s0 + $0x58] sm:$0xff]
    %v55 = vld [vmem:[%s0 + $0x60] sm:$0xff]
    %v56 = vld [vmem:[%s0 + $0x68] sm:$0xff]
    %v57 = vld [vmem:[%s0 + $0x70] sm:$0xff]
    %v58 = vld [vmem:[%s0 + $0x78] sm:$0xff]
    %v59 = vld [vmem:[%s2] sm:$0xff]
    %v60 = vld [vmem:[%s2 + $0x8] sm:$0xff]
    %v61 = vld [vmem:[%s2 + $0x10] sm:$0xff]
    %v62 = vld [vmem:[%s2 + $0x18] sm:$0xff]
    %v63 = vld [vmem:[%s2 + $0x20] sm:$0xff]
    %v64 = vld [vmem:[%s2 + $0x28] sm:$0xff]
    %v65 = vld [vmem:[%s2 + $0x30] sm:$0xff]
    %v66 = vld [vmem:[%s2 + $0x38] sm:$0xff]
    %68 = vset.pattern.permute.xlu0 0
    %69 = vperm.xlu0 %68, %v59
    %v70 = vpop.permute.xlu0 %69
    %73 = vset.pattern.permute.xlu0 0
    %74 = vperm.xlu0 %73, %v60
    %v75 = vpop.permute.xlu0 %74
    %78 = vset.pattern.permute.xlu0 0
    %79 = vperm.xlu0 %78, %v61
    %v80 = vpop.permute.xlu0 %79
    %83 = vset.pattern.permute.xlu0 0
    %84 = vperm.xlu0 %83, %v62
    %v85 = vpop.permute.xlu0 %84
    %88 = vset.pattern.permute.xlu0 0
    %89 = vperm.xlu0 %88, %v63
    %v90 = vpop.permute.xlu0 %89
    %93 = vset.pattern.permute.xlu0 0
    %94 = vperm.xlu0 %93, %v64
    %v95 = vpop.permute.xlu0 %94
    %98 = vset.pattern.permute.xlu0 0
    %99 = vperm.xlu0 %98, %v65
    %v100 = vpop.permute.xlu0 %99
    %103 = vset.pattern.permute.xlu0 0
    %104 = vperm.xlu0 %103, %v66
    %v105 = vpop.permute.xlu0 %104
    %vm107 = vcmask 97280
    %v109 = vsel %vm107, %v35, 0
    %v112 = vsel %vm107, %v36, 0
    %v115 = vsel %vm107, %v37, 0
    %v118 = vsel %vm107, %v38, 0
    %v121 = vsel %vm107, %v39, 0
    %v124 = vsel %vm107, %v40, 0
    %v127 = vsel %vm107, %v41, 0
    %v130 = vsel %vm107, %v42, 0
    %v133 = vsel %vm107, %v43, 0
    %v136 = vsel %vm107, %v44, 0
    %v139 = vsel %vm107, %v45, 0
    %v142 = vsel %vm107, %v46, 0
    %v145 = vsel %vm107, %v47, 0
    %v148 = vsel %vm107, %v48, 0
    %v151 = vsel %vm107, %v49, 0
    %v154 = vsel %vm107, %v50, 0
    %v157 = vsel %vm107, %v51, 0
    %v160 = vsel %vm107, %v52, 0
    %v163 = vsel %vm107, %v53, 0
    %v166 = vsel %vm107, %v54, 0
    %v169 = vsel %vm107, %v55, 0
    %v172 = vsel %vm107, %v56, 0
    %v175 = vsel %vm107, %v57, 0
    %v178 = vsel %vm107, %v58, 0
    %180 = vmatprep.subr.mxu0 0.0
    %181 = vmatpush1.xpose.msra.mxu0 %v133
    %182 = vmatprep.subr.mxu0 0.0
    %183 = vmatpush1.xpose.msra.mxu0 %v136
    %184 = vmatprep.subr.mxu0 0.0
    %185 = vmatpush1.xpose.msra.mxu0 %v139
    %186 = vmatprep.subr.mxu0 0.0
    %187 = vmatpush1.xpose.msra.mxu0 %v142
    %188 = vmatprep.subr.mxu0 0.0
    %189 = vmatpush1.xpose.msra.mxu0 %v145
    %190 = vmatprep.subr.mxu0 0.0
    %191 = vmatpush1.xpose.msra.mxu0 %v148
    %192 = vmatprep.subr.mxu0 0.0
    %193 = vmatpush1.xpose.msra.mxu0 %v151
    %194 = vmatprep.subr.mxu0 0.0
    %195 = vmatpush1.xpose.msra.mxu0 %v154
    %196 = vmatprep.subr.mxu0 0.0
    %197 = vmatpush1.xpose.msra.mxu0 %v157
    %198 = vmatprep.subr.mxu0 0.0
    %199 = vmatpush1.xpose.msra.mxu0 %v160
    %200 = vmatprep.subr.mxu0 0.0
    %201 = vmatpush1.xpose.msra.mxu0 %v163
    %202 = vmatprep.subr.mxu0 0.0
    %203 = vmatpush1.xpose.msra.mxu0 %v166
    %204 = vmatprep.subr.mxu0 0.0
    %205 = vmatpush1.xpose.msra.mxu0 %v169
    %206 = vmatprep.subr.mxu0 0.0
    %207 = vmatpush1.xpose.msra.mxu0 %v172
    %208 = vmatprep.subr.mxu0 0.0
    %209 = vmatpush1.xpose.msra.mxu0 %v175
    %210 = vmatprep.subr.mxu0 0.0
    %211 = vmatpush1.xpose.msra.mxu0 %v178
    %212 = vmatprep.subr.mxu0 0.0
    %213 = vmatpush1.xpose.msra.mxu0 0.0
    %214 = vmatprep.subr.mxu0 0.0
    %215 = vmatpush1.xpose.msra.mxu0 0.0
    %216 = vmatprep.subr.mxu0 0.0
    %217 = vmatpush1.xpose.msra.mxu0 0.0
    %218 = vmatprep.subr.mxu0 0.0
    %219 = vmatpush1.xpose.msra.mxu0 0.0
    %220 = vmatprep.subr.mxu0 0.0
    %221 = vmatpush1.xpose.msra.mxu0 0.0
    %222 = vmatprep.subr.mxu0 0.0
    %223 = vmatpush1.xpose.msra.mxu0 0.0
    %224 = vmatprep.subr.mxu0 0.0
    %225 = vmatpush1.xpose.msra.mxu0 0.0
    %226 = vmatprep.subr.mxu0 0.0
    %227 = vmatpush1.xpose.msra.mxu0 0.0
    %228 = vmatprep.subr.mxu0 0.0
    %229 = vmatpush1.xpose.msra.mxu0 0.0
    %230 = vmatprep.subr.mxu0 0.0
    %231 = vmatpush1.xpose.msra.mxu0 0.0
    %232 = vmatprep.subr.mxu0 0.0
    %233 = vmatpush1.xpose.msra.mxu0 0.0
    %234 = vmatprep.subr.mxu0 0.0
    %235 = vmatpush1.xpose.msra.mxu0 0.0
    %236 = vmatprep.subr.mxu0 0.0
    %237 = vmatpush1.xpose.msra.mxu0 0.0
    %238 = vmatprep.subr.mxu0 0.0
    %239 = vmatpush1.xpose.msra.mxu0 0.0
    %240 = vmatprep.subr.mxu0 0.0
    %241 = vmatpush1.xpose.msra.mxu0 0.0
    %242 = vmatprep.subr.mxu0 0.0
    %243 = vmatpush1.xpose.msra.mxu0 0.0
    %244 = vmatprep.mubr.f32.mxu0 0.0
    %245 = vmatmul.mubr.f32.gmra.mrb[0].mxu0 %v109
    %v246 = vpop.f32.mrb[0].mxu0
    %v247 = vadd.f32 %v70, %v246
    %v248 = vpop.f32.mrb[0].mxu0
    %249 = vmatprep.mubr.f32.mxu0 0.0
    %250 = vmatmul.mubr.f32.gmra.mrb[0].mxu0 %v112
    %v251 = vpop.f32.mrb[0].mxu0
    %v252 = vadd.f32 %v75, %v251
    %v253 = vpop.f32.mrb[0].mxu0
    %254 = vmatprep.mubr.f32.mxu0 0.0
    %255 = vmatmul.mubr.f32.gmra.mrb[0].mxu0 %v115
    %v256 = vpop.f32.mrb[0].mxu0
    %v257 = vadd.f32 %v80, %v256
    %v258 = vpop.f32.mrb[0].mxu0
    %259 = vmatprep.mubr.f32.mxu0 0.0
    %260 = vmatmul.mubr.f32.gmra.mrb[0].mxu0 %v118
    %v261 = vpop.f32.mrb[0].mxu0
    %v262 = vadd.f32 %v85, %v261
    %v263 = vpop.f32.mrb[0].mxu0
    %264 = vmatprep.mubr.f32.mxu0 0.0
    %265 = vmatmul.mubr.f32.gmra.mrb[0].mxu0 %v121
    %v266 = vpop.f32.mrb[0].mxu0
    %v267 = vadd.f32 %v90, %v266
    %v268 = vpop.f32.mrb[0].mxu0
    %269 = vmatprep.mubr.f32.mxu0 0.0
    %270 = vmatmul.mubr.f32.gmra.mrb[0].mxu0 %v124
    %v271 = vpop.f32.mrb[0].mxu0
    %v272 = vadd.f32 %v95, %v271
    %v273 = vpop.f32.mrb[0].mxu0
    %274 = vmatprep.mubr.f32.mxu0 0.0
    %275 = vmatmul.mubr.f32.gmra.mrb[0].mxu0 %v127
    %v276 = vpop.f32.mrb[0].mxu0
    %v277 = vadd.f32 %v100, %v276
    %v278 = vpop.f32.mrb[0].mxu0
    %279 = vmatprep.mubr.f32.mxu0 0.0
    %280 = vmatmul.mubr.f32.gmra.mrb[0].mxu0 %v130
    %v281 = vpop.f32.mrb[0].mxu0
    %v282 = vadd.f32 %v105, %v281
    %v283 = vpop.f32.mrb[0].mxu0
    %284 = vdwg.mxu0
    %v285 = vmax.f32 %v247, 0.0
    %v286 = vmax.f32 %v252, 0.0
    %v287 = vmax.f32 %v257, 0.0
    %v288 = vmax.f32 %v262, 0.0
    %v289 = vmax.f32 %v267, 0.0
    %v290 = vmax.f32 %v272, 0.0
    %v291 = vmax.f32 %v277, 0.0
    %v292 = vmax.f32 %v282, 0.0
    %v293 = vld [vmem:[%s3] sm:$0xff]
    %v294 = vld [vmem:[%s3 + $0x8] sm:$0xff]
    %v295 = vld [vmem:[%s3 + $0x10] sm:$0xff]
    %v296 = vld [vmem:[%s3 + $0x18] sm:$0xff]
    %v297 = vld [vmem:[%s3 + $0x20] sm:$0xff]
    %v298 = vld [vmem:[%s3 + $0x28] sm:$0xff]
    %v299 = vld [vmem:[%s3 + $0x30] sm:$0xff]
    %v300 = vld [vmem:[%s3 + $0x38] sm:$0xff]
    %v301 = vld [vmem:[%s3 + $0x40] sm:$0xff]
    %v302 = vld [vmem:[%s3 + $0x48] sm:$0xff]
    %v303 = vld [vmem:[%s3 + $0x50] sm:$0xff]
    %v304 = vld [vmem:[%s3 + $0x58] sm:$0xff]
    %v305 = vld [vmem:[%s3 + $0x60] sm:$0xff]
    %v306 = vld [vmem:[%s3 + $0x68] sm:$0xff]
    %v307 = vld [vmem:[%s3 + $0x70] sm:$0xff]
    %v308 = vld [vmem:[%s3 + $0x78] sm:$0xff]
    %v309 = vld [vmem:[%s3 + $0x80] sm:$0xff]
    %v310 = vld [vmem:[%s3 + $0x88] sm:$0xff]
    %v311 = vld [vmem:[%s3 + $0x90] sm:$0xff]
    %v312 = vld [vmem:[%s3 + $0x98] sm:$0xff]
    %v313 = vld [vmem:[%s3 + $0xa0] sm:$0xff]
    %v314 = vld [vmem:[%s3 + $0xa8] sm:$0xff]
    %v315 = vld [vmem:[%s3 + $0xb0] sm:$0xff]
    %v316 = vld [vmem:[%s3 + $0xb8] sm:$0xff]
    %v317 = vld [vmem:[%s3 + $0xc0] sm:$0xff]
    %v318 = vld [vmem:[%s3 + $0xc8] sm:$0xff]
    %v319 = vld [vmem:[%s3 + $0xd0] sm:$0xff]
    %v320 = vld [vmem:[%s3 + $0xd8] sm:$0xff]
    %v321 = vld [vmem:[%s3 + $0xe0] sm:$0xff]
    %v322 = vld [vmem:[%s3 + $0xe8] sm:$0xff]
    %v323 = vld [vmem:[%s3 + $0xf0] sm:$0xff]
    %v324 = vld [vmem:[%s3 + $0xf8] sm:$0xff]
    %v325 = vld [vmem:[%s4] sm:$0xff]
    %v326 = vld [vmem:[%s4 + $0x8] sm:$0xff]
    %v327 = vld [vmem:[%s4 + $0x10] sm:$0xff]
    %v328 = vld [vmem:[%s4 + $0x18] sm:$0xff]
    %v329 = vld [vmem:[%s4 + $0x20] sm:$0xff]
    %v330 = vld [vmem:[%s4 + $0x28] sm:$0xff]
    %v331 = vld [vmem:[%s4 + $0x30] sm:$0xff]
    %v332 = vld [vmem:[%s4 + $0x38] sm:$0xff]
    %v333 = vld [vmem:[%s4 + $0x40] sm:$0xff]
    %v334 = vld [vmem:[%s4 + $0x48] sm:$0xff]
    %v335 = vld [vmem:[%s4 + $0x50] sm:$0xff]
    %v336 = vld [vmem:[%s4 + $0x58] sm:$0xff]
    %v337 = vld [vmem:[%s4 + $0x60] sm:$0xff]
    %v338 = vld [vmem:[%s4 + $0x68] sm:$0xff]
    %v339 = vld [vmem:[%s4 + $0x70] sm:$0xff]
    %v340 = vld [vmem:[%s4 + $0x78] sm:$0xff]
    %v341 = vld [vmem:[%s4 + $0x80] sm:$0xff]
    %v342 = vld [vmem:[%s4 + $0x88] sm:$0xff]
    %v343 = vld [vmem:[%s4 + $0x90] sm:$0xff]
    %v344 = vld [vmem:[%s4 + $0x98] sm:$0xff]
    %v345 = vld [vmem:[%s4 + $0xa0] sm:$0xff]
    %v346 = vld [vmem:[%s4 + $0xa8] sm:$0xff]
    %v347 = vld [vmem:[%s4 + $0xb0] sm:$0xff]
    %v348 = vld [vmem:[%s4 + $0xb8] sm:$0xff]
    %v349 = vld [vmem:[%s4 + $0xc0] sm:$0xff]
    %v350 = vld [vmem:[%s4 + $0xc8] sm:$0xff]
    %v351 = vld [vmem:[%s4 + $0xd0] sm:$0xff]
    %v352 = vld [vmem:[%s4 + $0xd8] sm:$0xff]
    %v353 = vld [vmem:[%s4 + $0xe0] sm:$0xff]
    %v354 = vld [vmem:[%s4 + $0xe8] sm:$0xff]
    %v355 = vld [vmem:[%s4 + $0xf0] sm:$0xff]
    %v356 = vld [vmem:[%s4 + $0xf8] sm:$0xff]
    %358 = vset.pattern.permute.xlu0 0
    %359 = vperm.xlu0 %358, %v325
    %v360 = vpop.permute.xlu0 %359
    %363 = vset.pattern.permute.xlu0 0
    %364 = vperm.xlu0 %363, %v326
    %v365 = vpop.permute.xlu0 %364
    %368 = vset.pattern.permute.xlu0 0
    %369 = vperm.xlu0 %368, %v327
    %v370 = vpop.permute.xlu0 %369
    %373 = vset.pattern.permute.xlu0 0
    %374 = vperm.xlu0 %373, %v328
    %v375 = vpop.permute.xlu0 %374
    %378 = vset.pattern.permute.xlu0 0
    %379 = vperm.xlu0 %378, %v329
    %v380 = vpop.permute.xlu0 %379
    %383 = vset.pattern.permute.xlu0 0
    %384 = vperm.xlu0 %383, %v330
    %v385 = vpop.permute.xlu0 %384
    %388 = vset.pattern.permute.xlu0 0
    %389 = vperm.xlu0 %388, %v331
    %v390 = vpop.permute.xlu0 %389
    %393 = vset.pattern.permute.xlu0 0
    %394 = vperm.xlu0 %393, %v332
    %v395 = vpop.permute.xlu0 %394
    %398 = vset.pattern.permute.xlu0 0
    %399 = vperm.xlu0 %398, %v333
    %v400 = vpop.permute.xlu0 %399
    %403 = vset.pattern.permute.xlu0 0
    %404 = vperm.xlu0 %403, %v334
    %v405 = vpop.permute.xlu0 %404
    %408 = vset.pattern.permute.xlu0 0
    %409 = vperm.xlu0 %408, %v335
    %v410 = vpop.permute.xlu0 %409
    %413 = vset.pattern.permute.xlu0 0
    %414 = vperm.xlu0 %413, %v336
    %v415 = vpop.permute.xlu0 %414
    %418 = vset.pattern.permute.xlu0 0
    %419 = vperm.xlu0 %418, %v337
    %v420 = vpop.permute.xlu0 %419
    %423 = vset.pattern.permute.xlu0 0
    %424 = vperm.xlu0 %423, %v338
    %v425 = vpop.permute.xlu0 %424
    %428 = vset.pattern.permute.xlu0 0
    %429 = vperm.xlu0 %428, %v339
    %v430 = vpop.permute.xlu0 %429
    %433 = vset.pattern.permute.xlu0 0
    %434 = vperm.xlu0 %433, %v340
    %v435 = vpop.permute.xlu0 %434
    %438 = vset.pattern.permute.xlu0 0
    %439 = vperm.xlu0 %438, %v341
    %v440 = vpop.permute.xlu0 %439
    %443 = vset.pattern.permute.xlu0 0
    %444 = vperm.xlu0 %443, %v342
    %v445 = vpop.permute.xlu0 %444
    %448 = vset.pattern.permute.xlu0 0
    %449 = vperm.xlu0 %448, %v343
    %v450 = vpop.permute.xlu0 %449
    %453 = vset.pattern.permute.xlu0 0
    %454 = vperm.xlu0 %453, %v344
    %v455 = vpop.permute.xlu0 %454
    %458 = vset.pattern.permute.xlu0 0
    %459 = vperm.xlu0 %458, %v345
    %v460 = vpop.permute.xlu0 %459
    %463 = vset.pattern.permute.xlu0 0
    %464 = vperm.xlu0 %463, %v346
    %v465 = vpop.permute.xlu0 %464
    %468 = vset.pattern.permute.xlu0 0
    %469 = vperm.xlu0 %468, %v347
    %v470 = vpop.permute.xlu0 %469
    %473 = vset.pattern.permute.xlu0 0
    %474 = vperm.xlu0 %473, %v348
    %v475 = vpop.permute.xlu0 %474
    %478 = vset.pattern.permute.xlu0 0
    %479 = vperm.xlu0 %478, %v349
    %v480 = vpop.permute.xlu0 %479
    %483 = vset.pattern.permute.xlu0 0
    %484 = vperm.xlu0 %483, %v350
    %v485 = vpop.permute.xlu0 %484
    %488 = vset.pattern.permute.xlu0 0
    %489 = vperm.xlu0 %488, %v351
    %v490 = vpop.permute.xlu0 %489
    %493 = vset.pattern.permute.xlu0 0
    %494 = vperm.xlu0 %493, %v352
    %v495 = vpop.permute.xlu0 %494
    %498 = vset.pattern.permute.xlu0 0
    %499 = vperm.xlu0 %498, %v353
    %v500 = vpop.permute.xlu0 %499
    %503 = vset.pattern.permute.xlu0 0
    %504 = vperm.xlu0 %503, %v354
    %v505 = vpop.permute.xlu0 %504
    %508 = vset.pattern.permute.xlu0 0
    %509 = vperm.xlu0 %508, %v355
    %v510 = vpop.permute.xlu0 %509
    %513 = vset.pattern.permute.xlu0 0
    %514 = vperm.xlu0 %513, %v356
    %v515 = vpop.permute.xlu0 %514
    %vm517 = vcmask 523264
    %v519 = vsel %vm517, %v293, 0
    %v522 = vsel %vm517, %v294, 0
    %v525 = vsel %vm517, %v295, 0
    %v528 = vsel %vm517, %v296, 0
    %v531 = vsel %vm517, %v297, 0
    %v534 = vsel %vm517, %v298, 0
    %v537 = vsel %vm517, %v299, 0
    %v540 = vsel %vm517, %v300, 0
    %v543 = vsel %vm517, %v301, 0
    %v546 = vsel %vm517, %v302, 0
    %v549 = vsel %vm517, %v303, 0
    %v552 = vsel %vm517, %v304, 0
    %v555 = vsel %vm517, %v305, 0
    %v558 = vsel %vm517, %v306, 0
    %v561 = vsel %vm517, %v307, 0
    %v564 = vsel %vm517, %v308, 0
    %v567 = vsel %vm517, %v309, 0
    %v570 = vsel %vm517, %v310, 0
    %v573 = vsel %vm517, %v311, 0
    %v576 = vsel %vm517, %v312, 0
    %v579 = vsel %vm517, %v313, 0
    %v582 = vsel %vm517, %v314, 0
    %v585 = vsel %vm517, %v315, 0
    %v588 = vsel %vm517, %v316, 0
    %v591 = vsel %vm517, %v317, 0
    %v594 = vsel %vm517, %v318, 0
    %v597 = vsel %vm517, %v319, 0
    %v600 = vsel %vm517, %v320, 0
    %v603 = vsel %vm517, %v321, 0
    %v606 = vsel %vm517, %v322, 0
    %v609 = vsel %vm517, %v323, 0
    %v612 = vsel %vm517, %v324, 0
    %614 = vmatprep.subr.mxu0 0.0
    %615 = vmatpush1.msra.mxu0 %v285
    %616 = vmatprep.subr.mxu0 0.0
    %617 = vmatpush1.msra.mxu0 %v286
    %618 = vmatprep.subr.mxu0 0.0
    %619 = vmatpush1.msra.mxu0 %v287
    %620 = vmatprep.subr.mxu0 0.0
    %621 = vmatpush1.msra.mxu0 %v288
    %622 = vmatprep.subr.mxu0 0.0
    %623 = vmatpush1.msra.mxu0 %v289
    %624 = vmatprep.subr.mxu0 0.0
    %625 = vmatpush1.msra.mxu0 %v290
    %626 = vmatprep.subr.mxu0 0.0
    %627 = vmatpush1.msra.mxu0 %v291
    %628 = vmatprep.subr.mxu0 0.0
    %629 = vmatpush1.msra.mxu0 %v292
    %630 = vmatprep.subr.mxu0 0.0
    %631 = vmatpush1.msra.mxu0 0.0
    %632 = vmatprep.subr.mxu0 0.0
    %633 = vmatpush1.msra.mxu0 0.0
    %634 = vmatprep.subr.mxu0 0.0
    %635 = vmatpush1.msra.mxu0 0.0
    %636 = vmatprep.subr.mxu0 0.0
    %637 = vmatpush1.msra.mxu0 0.0
    %638 = vmatprep.subr.mxu0 0.0
    %639 = vmatpush1.msra.mxu0 0.0
    %640 = vmatprep.subr.mxu0 0.0
    %641 = vmatpush1.msra.mxu0 0.0
    %642 = vmatprep.subr.mxu0 0.0
    %643 = vmatpush1.msra.mxu0 0.0
    %644 = vmatprep.subr.mxu0 0.0
    %645 = vmatpush1.msra.mxu0 0.0
    %646 = vmatprep.subr.mxu0 0.0
    %647 = vmatpush1.msra.mxu0 0.0
    %648 = vmatprep.subr.mxu0 0.0
    %649 = vmatpush1.msra.mxu0 0.0
    %650 = vmatprep.subr.mxu0 0.0
    %651 = vmatpush1.msra.mxu0 0.0
    %652 = vmatprep.subr.mxu0 0.0
    %653 = vmatpush1.msra.mxu0 0.0
    %654 = vmatprep.subr.mxu0 0.0
    %655 = vmatpush1.msra.mxu0 0.0
    %656 = vmatprep.subr.mxu0 0.0
    %657 = vmatpush1.msra.mxu0 0.0
    %658 = vmatprep.subr.mxu0 0.0
    %659 = vmatpush1.msra.mxu0 0.0
    %660 = vmatprep.subr.mxu0 0.0
    %661 = vmatpush1.msra.mxu0 0.0
    %662 = vmatprep.subr.mxu0 0.0
    %663 = vmatpush1.msra.mxu0 0.0
    %664 = vmatprep.subr.mxu0 0.0
    %665 = vmatpush1.msra.mxu0 0.0
    %666 = vmatprep.subr.mxu0 0.0
    %667 = vmatpush1.msra.mxu0 0.0
    %668 = vmatprep.subr.mxu0 0.0
    %669 = vmatpush1.msra.mxu0 0.0
    %670 = vmatprep.subr.mxu0 0.0
    %671 = vmatpush1.msra.mxu0 0.0
    %672 = vmatprep.subr.mxu0 0.0
    %673 = vmatpush1.msra.mxu0 0.0
    %674 = vmatprep.subr.mxu0 0.0
    %675 = vmatpush1.msra.mxu0 0.0
    %676 = vmatprep.subr.mxu0 0.0
    %677 = vmatpush1.msra.mxu0 0.0
    %678 = vmatprep.mubr.f32.mxu0 0.0
    %679 = vmatmul.mubr.f32.gmra.mrb[0].mxu0 %v519
    %v680 = vpop.f32.mrb[0].mxu0
    %v681 = vadd.f32 %v360, %v680
    %v682 = vpop.f32.mrb[0].mxu0
    %683 = vmatprep.mubr.f32.mxu0 0.0
    %684 = vmatmul.mubr.f32.gmra.mrb[0].mxu0 %v522
    %v685 = vpop.f32.mrb[0].mxu0
    %v686 = vadd.f32 %v365, %v685
    %v687 = vpop.f32.mrb[0].mxu0
    %688 = vmatprep.mubr.f32.mxu0 0.0
    %689 = vmatmul.mubr.f32.gmra.mrb[0].mxu0 %v525
    %v690 = vpop.f32.mrb[0].mxu0
    %v691 = vadd.f32 %v370, %v690
    %v692 = vpop.f32.mrb[0].mxu0
    %693 = vmatprep.mubr.f32.mxu0 0.0
    %694 = vmatmul.mubr.f32.gmra.mrb[0].mxu0 %v528
    %v695 = vpop.f32.mrb[0].mxu0
    %v696 = vadd.f32 %v375, %v695
    %v697 = vpop.f32.mrb[0].mxu0
    %698 = vmatprep.mubr.f32.mxu0 0.0
    %699 = vmatmul.mubr.f32.gmra.mrb[0].mxu0 %v531
    %v700 = vpop.f32.mrb[0].mxu0
    %v701 = vadd.f32 %v380, %v700
    %v702 = vpop.f32.mrb[0].mxu0
    %703 = vmatprep.mubr.f32.mxu0 0.0
    %704 = vmatmul.mubr.f32.gmra.mrb[0].mxu0 %v534
    %v705 = vpop.f32.mrb[0].mxu0
    %v706 = vadd.f32 %v385, %v705
    %v707 = vpop.f32.mrb[0].mxu0
    %708 = vmatprep.mubr.f32.mxu0 0.0
    %709 = vmatmul.mubr.f32.gmra.mrb[0].mxu0 %v537
    %v710 = vpop.f32.mrb[0].mxu0
    %v711 = vadd.f32 %v390, %v710
    %v712 = vpop.f32.mrb[0].mxu0
    %713 = vmatprep.mubr.f32.mxu0 0.0
    %714 = vmatmul.mubr.f32.gmra.mrb[0].mxu0 %v540
    %v715 = vpop.f32.mrb[0].mxu0
    %v716 = vadd.f32 %v395, %v715
    %v717 = vpop.f32.mrb[0].mxu0
    %718 = vmatprep.mubr.f32.mxu0 0.0
    %719 = vmatmul.mubr.f32.gmra.mrb[0].mxu0 %v543
    %v720 = vpop.f32.mrb[0].mxu0
    %v721 = vadd.f32 %v400, %v720
    %v722 = vpop.f32.mrb[0].mxu0
    %723 = vmatprep.mubr.f32.mxu0 0.0
    %724 = vmatmul.mubr.f32.gmra.mrb[0].mxu0 %v546
    %v725 = vpop.f32.mrb[0].mxu0
    %v726 = vadd.f32 %v405, %v725
    %v727 = vpop.f32.mrb[0].mxu0
    %728 = vmatprep.mubr.f32.mxu0 0.0
    %729 = vmatmul.mubr.f32.gmra.mrb[0].mxu0 %v549
    %v730 = vpop.f32.mrb[0].mxu0
    %v731 = vadd.f32 %v410, %v730
    %v732 = vpop.f32.mrb[0].mxu0
    %733 = vmatprep.mubr.f32.mxu0 0.0
    %734 = vmatmul.mubr.f32.gmra.mrb[0].mxu0 %v552
    %v735 = vpop.f32.mrb[0].mxu0
    %v736 = vadd.f32 %v415, %v735
    %v737 = vpop.f32.mrb[0].mxu0
    %738 = vmatprep.mubr.f32.mxu0 0.0
    %739 = vmatmul.mubr.f32.gmra.mrb[0].mxu0 %v555
    %v740 = vpop.f32.mrb[0].mxu0
    %v741 = vadd.f32 %v420, %v740
    %v742 = vpop.f32.mrb[0].mxu0
    %743 = vmatprep.mubr.f32.mxu0 0.0
    %744 = vmatmul.mubr.f32.gmra.mrb[0].mxu0 %v558
    %v745 = vpop.f32.mrb[0].mxu0
    %v746 = vadd.f32 %v425, %v745
    %v747 = vpop.f32.mrb[0].mxu0
    %748 = vmatprep.mubr.f32.mxu0 0.0
    %749 = vmatmul.mubr.f32.gmra.mrb[0].mxu0 %v561
    %v750 = vpop.f32.mrb[0].mxu0
    %v751 = vadd.f32 %v430, %v750
    %v752 = vpop.f32.mrb[0].mxu0
    %753 = vmatprep.mubr.f32.mxu0 0.0
    %754 = vmatmul.mubr.f32.gmra.mrb[0].mxu0 %v564
    %v755 = vpop.f32.mrb[0].mxu0
    %v756 = vadd.f32 %v435, %v755
    %v757 = vpop.f32.mrb[0].mxu0
    %758 = vmatprep.mubr.f32.mxu0 0.0
    %759 = vmatmul.mubr.f32.gmra.mrb[0].mxu0 %v567
    %v760 = vpop.f32.mrb[0].mxu0
    %v761 = vadd.f32 %v440, %v760
    %v762 = vpop.f32.mrb[0].mxu0
    %763 = vmatprep.mubr.f32.mxu0 0.0
    %764 = vmatmul.mubr.f32.gmra.mrb[0].mxu0 %v570
    %v765 = vpop.f32.mrb[0].mxu0
    %v766 = vadd.f32 %v445, %v765
    %v767 = vpop.f32.mrb[0].mxu0
    %768 = vmatprep.mubr.f32.mxu0 0.0
    %769 = vmatmul.mubr.f32.gmra.mrb[0].mxu0 %v573
    %v770 = vpop.f32.mrb[0].mxu0
    %v771 = vadd.f32 %v450, %v770
    %v772 = vpop.f32.mrb[0].mxu0
    %773 = vmatprep.mubr.f32.mxu0 0.0
    %774 = vmatmul.mubr.f32.gmra.mrb[0].mxu0 %v576
    %v775 = vpop.f32.mrb[0].mxu0
    %v776 = vadd.f32 %v455, %v775
    %v777 = vpop.f32.mrb[0].mxu0
    %778 = vmatprep.mubr.f32.mxu0 0.0
    %779 = vmatmul.mubr.f32.gmra.mrb[0].mxu0 %v579
    %v780 = vpop.f32.mrb[0].mxu0
    %v781 = vadd.f32 %v460, %v780
    %v782 = vpop.f32.mrb[0].mxu0
    %783 = vmatprep.mubr.f32.mxu0 0.0
    %784 = vmatmul.mubr.f32.gmra.mrb[0].mxu0 %v582
    %v785 = vpop.f32.mrb[0].mxu0
    %v786 = vadd.f32 %v465, %v785
    %v787 = vpop.f32.mrb[0].mxu0
    %788 = vmatprep.mubr.f32.mxu0 0.0
    %789 = vmatmul.mubr.f32.gmra.mrb[0].mxu0 %v585
    %v790 = vpop.f32.mrb[0].mxu0
    %v791 = vadd.f32 %v470, %v790
    %v792 = vpop.f32.mrb[0].mxu0
    %793 = vmatprep.mubr.f32.mxu0 0.0
    %794 = vmatmul.mubr.f32.gmra.mrb[0].mxu0 %v588
    %v795 = vpop.f32.mrb[0].mxu0
    %v796 = vadd.f32 %v475, %v795
    %v797 = vpop.f32.mrb[0].mxu0
    %798 = vmatprep.mubr.f32.mxu0 0.0
    %799 = vmatmul.mubr.f32.gmra.mrb[0].mxu0 %v591
    %v800 = vpop.f32.mrb[0].mxu0
    %v801 = vadd.f32 %v480, %v800
    %v802 = vpop.f32.mrb[0].mxu0
    %803 = vmatprep.mubr.f32.mxu0 0.0
    %804 = vmatmul.mubr.f32.gmra.mrb[0].mxu0 %v594
    %v805 = vpop.f32.mrb[0].mxu0
    %v806 = vadd.f32 %v485, %v805
    %v807 = vpop.f32.mrb[0].mxu0
    %808 = vmatprep.mubr.f32.mxu0 0.0
    %809 = vmatmul.mubr.f32.gmra.mrb[0].mxu0 %v597
    %v810 = vpop.f32.mrb[0].mxu0
    %v811 = vadd.f32 %v490, %v810
    %v812 = vpop.f32.mrb[0].mxu0
    %813 = vmatprep.mubr.f32.mxu0 0.0
    %814 = vmatmul.mubr.f32.gmra.mrb[0].mxu0 %v600
    %v815 = vpop.f32.mrb[0].mxu0
    %v816 = vadd.f32 %v495, %v815
    %v817 = vpop.f32.mrb[0].mxu0
    %818 = vmatprep.mubr.f32.mxu0 0.0
    %819 = vmatmul.mubr.f32.gmra.mrb[0].mxu0 %v603
    %v820 = vpop.f32.mrb[0].mxu0
    %v821 = vadd.f32 %v500, %v820
    %v822 = vpop.f32.mrb[0].mxu0
    %823 = vmatprep.mubr.f32.mxu0 0.0
    %824 = vmatmul.mubr.f32.gmra.mrb[0].mxu0 %v606
    %v825 = vpop.f32.mrb[0].mxu0
    %v826 = vadd.f32 %v505, %v825
    %v827 = vpop.f32.mrb[0].mxu0
    %828 = vmatprep.mubr.f32.mxu0 0.0
    %829 = vmatmul.mubr.f32.gmra.mrb[0].mxu0 %v609
    %v830 = vpop.f32.mrb[0].mxu0
    %v831 = vadd.f32 %v510, %v830
    %v832 = vpop.f32.mrb[0].mxu0
    %833 = vmatprep.mubr.f32.mxu0 0.0
    %834 = vmatmul.mubr.f32.gmra.mrb[0].mxu0 %v612
    %v835 = vpop.f32.mrb[0].mxu0
    %v836 = vadd.f32 %v515, %v835
    %v837 = vpop.f32.mrb[0].mxu0
    %838 = vdwg.mxu0
    %v839 = vmax.f32 %v681, 0.0
    %v840 = vmax.f32 %v686, 0.0
    %v841 = vmax.f32 %v691, 0.0
    %v842 = vmax.f32 %v696, 0.0
    %v843 = vmax.f32 %v701, 0.0
    %v844 = vmax.f32 %v706, 0.0
    %v845 = vmax.f32 %v711, 0.0
    %v846 = vmax.f32 %v716, 0.0
    %v847 = vmax.f32 %v721, 0.0
    %v848 = vmax.f32 %v726, 0.0
    %v849 = vmax.f32 %v731, 0.0
    %v850 = vmax.f32 %v736, 0.0
    %v851 = vmax.f32 %v741, 0.0
    %v852 = vmax.f32 %v746, 0.0
    %v853 = vmax.f32 %v751, 0.0
    %v854 = vmax.f32 %v756, 0.0
    %v855 = vmax.f32 %v761, 0.0
    %v856 = vmax.f32 %v766, 0.0
    %v857 = vmax.f32 %v771, 0.0
    %v858 = vmax.f32 %v776, 0.0
    %v859 = vmax.f32 %v781, 0.0
    %v860 = vmax.f32 %v786, 0.0
    %v861 = vmax.f32 %v791, 0.0
    %v862 = vmax.f32 %v796, 0.0
    %v863 = vmax.f32 %v801, 0.0
    %v864 = vmax.f32 %v806, 0.0
    %v865 = vmax.f32 %v811, 0.0
    %v866 = vmax.f32 %v816, 0.0
    %v867 = vmax.f32 %v821, 0.0
    %v868 = vmax.f32 %v826, 0.0
    %v869 = vmax.f32 %v831, 0.0
    %v870 = vmax.f32 %v836, 0.0
    %v871 = vld [vmem:[%s5] sm:$0xff]
    %v872 = vld [vmem:[%s5 + $0x8] sm:$0xff]
    %v873 = vld [vmem:[%s5 + $0x20] sm:$0xff]
    %v874 = vld [vmem:[%s5 + $0x28] sm:$0xff]
    %v875 = vld [vmem:[%s5 + $0x40] sm:$0xff]
    %v876 = vld [vmem:[%s5 + $0x48] sm:$0xff]
    %v877 = vld [vmem:[%s5 + $0x60] sm:$0xff]
    %v878 = vld [vmem:[%s5 + $0x68] sm:$0xff]
    %v879 = vld [vmem:[%s5 + $0x80] sm:$0xff]
    %v880 = vld [vmem:[%s5 + $0x88] sm:$0xff]
    %v881 = vld [vmem:[%s5 + $0xa0] sm:$0xff]
    %v882 = vld [vmem:[%s5 + $0xa8] sm:$0xff]
    %v883 = vld [vmem:[%s5 + $0xc0] sm:$0xff]
    %v884 = vld [vmem:[%s5 + $0xc8] sm:$0xff]
    %v885 = vld [vmem:[%s5 + $0xe0] sm:$0xff]
    %v886 = vld [vmem:[%s5 + $0xe8] sm:$0xff]
    %v887 = vld [vmem:[%s3 + $0x100] sm:$0xff]
    %v888 = vld [vmem:[%s3 + $0x108] sm:$0xff]
    %v889 = vld [vmem:[%s3 + $0x110] sm:$0xff]
    %v890 = vld [vmem:[%s3 + $0x118] sm:$0xff]
    %v891 = vld [vmem:[%s3 + $0x120] sm:$0xff]
    %v892 = vld [vmem:[%s3 + $0x128] sm:$0xff]
    %v893 = vld [vmem:[%s3 + $0x130] sm:$0xff]
    %v894 = vld [vmem:[%s3 + $0x138] sm:$0xff]
    %v895 = vld [vmem:[%s3 + $0x140] sm:$0xff]
    %v896 = vld [vmem:[%s3 + $0x148] sm:$0xff]
    %v897 = vld [vmem:[%s3 + $0x150] sm:$0xff]
    %v898 = vld [vmem:[%s3 + $0x158] sm:$0xff]
    %v899 = vld [vmem:[%s3 + $0x160] sm:$0xff]
    %v900 = vld [vmem:[%s3 + $0x168] sm:$0xff]
    %v901 = vld [vmem:[%s3 + $0x170] sm:$0xff]
    %v902 = vld [vmem:[%s3 + $0x178] sm:$0xff]
    %v903 = vld [vmem:[%s3 + $0x180] sm:$0xff]
    %v904 = vld [vmem:[%s3 + $0x188] sm:$0xff]
    %v905 = vld [vmem:[%s3 + $0x190] sm:$0xff]
    %v906 = vld [vmem:[%s3 + $0x198] sm:$0xff]
    %v907 = vld [vmem:[%s3 + $0x1a0] sm:$0xff]
    %v908 = vld [vmem:[%s3 + $0x1a8] sm:$0xff]
    %v909 = vld [vmem:[%s3 + $0x1b0] sm:$0xff]
    %v910 = vld [vmem:[%s3 + $0x1b8] sm:$0xff]
    %v911 = vld [vmem:[%s3 + $0x1c0] sm:$0xff]
    %v912 = vld [vmem:[%s3 + $0x1c8] sm:$0xff]
    %v913 = vld [vmem:[%s3 + $0x1d0] sm:$0xff]
    %v914 = vld [vmem:[%s3 + $0x1d8] sm:$0xff]
    %v915 = vld [vmem:[%s3 + $0x1e0] sm:$0xff]
    %v916 = vld [vmem:[%s3 + $0x1e8] sm:$0xff]
    %v917 = vld [vmem:[%s3 + $0x1f0] sm:$0xff]
    %v918 = vld [vmem:[%s3 + $0x1f8] sm:$0xff]
    %v919 = vld [vmem:[%s4 + $0x100] sm:$0xff]
    %v920 = vld [vmem:[%s4 + $0x108] sm:$0xff]
    %v921 = vld [vmem:[%s4 + $0x110] sm:$0xff]
    %v922 = vld [vmem:[%s4 + $0x118] sm:$0xff]
    %v923 = vld [vmem:[%s4 + $0x120] sm:$0xff]
    %v924 = vld [vmem:[%s4 + $0x128] sm:$0xff]
    %v925 = vld [vmem:[%s4 + $0x130] sm:$0xff]
    %v926 = vld [vmem:[%s4 + $0x138] sm:$0xff]
    %v927 = vld [vmem:[%s4 + $0x140] sm:$0xff]
    %v928 = vld [vmem:[%s4 + $0x148] sm:$0xff]
    %v929 = vld [vmem:[%s4 + $0x150] sm:$0xff]
    %v930 = vld [vmem:[%s4 + $0x158] sm:$0xff]
    %v931 = vld [vmem:[%s4 + $0x160] sm:$0xff]
    %v932 = vld [vmem:[%s4 + $0x168] sm:$0xff]
    %v933 = vld [vmem:[%s4 + $0x170] sm:$0xff]
    %v934 = vld [vmem:[%s4 + $0x178] sm:$0xff]
    %v935 = vld [vmem:[%s4 + $0x180] sm:$0xff]
    %v936 = vld [vmem:[%s4 + $0x188] sm:$0xff]
    %v937 = vld [vmem:[%s4 + $0x190] sm:$0xff]
    %v938 = vld [vmem:[%s4 + $0x198] sm:$0xff]
    %v939 = vld [vmem:[%s4 + $0x1a0] sm:$0xff]
    %v940 = vld [vmem:[%s4 + $0x1a8] sm:$0xff]
    %v941 = vld [vmem:[%s4 + $0x1b0] sm:$0xff]
    %v942 = vld [vmem:[%s4 + $0x1b8] sm:$0xff]
    %v943 = vld [vmem:[%s4 + $0x1c0] sm:$0xff]
    %v944 = vld [vmem:[%s4 + $0x1c8] sm:$0xff]
    %v945 = vld [vmem:[%s4 + $0x1d0] sm:$0xff]
    %v946 = vld [vmem:[%s4 + $0x1d8] sm:$0xff]
    %v947 = vld [vmem:[%s4 + $0x1e0] sm:$0xff]
    %v948 = vld [vmem:[%s4 + $0x1e8] sm:$0xff]
    %v949 = vld [vmem:[%s4 + $0x1f0] sm:$0xff]
    %v950 = vld [vmem:[%s4 + $0x1f8] sm:$0xff]
    %952 = vset.pattern.permute.xlu0 0
    %953 = vperm.xlu0 %952, %v919
    %v954 = vpop.permute.xlu0 %953
    %957 = vset.pattern.permute.xlu0 0
    %958 = vperm.xlu0 %957, %v920
    %v959 = vpop.permute.xlu0 %958
    %962 = vset.pattern.permute.xlu0 0
    %963 = vperm.xlu0 %962, %v921
    %v964 = vpop.permute.xlu0 %963
    %967 = vset.pattern.permute.xlu0 0
    %968 = vperm.xlu0 %967, %v922
    %v969 = vpop.permute.xlu0 %968
    %972 = vset.pattern.permute.xlu0 0
    %973 = vperm.xlu0 %972, %v923
    %v974 = vpop.permute.xlu0 %973
    %977 = vset.pattern.permute.xlu0 0
    %978 = vperm.xlu0 %977, %v924
    %v979 = vpop.permute.xlu0 %978
    %982 = vset.pattern.permute.xlu0 0
    %983 = vperm.xlu0 %982, %v925
    %v984 = vpop.permute.xlu0 %983
    %987 = vset.pattern.permute.xlu0 0
    %988 = vperm.xlu0 %987, %v926
    %v989 = vpop.permute.xlu0 %988
    %992 = vset.pattern.permute.xlu0 0
    %993 = vperm.xlu0 %992, %v927
    %v994 = vpop.permute.xlu0 %993
    %997 = vset.pattern.permute.xlu0 0
    %998 = vperm.xlu0 %997, %v928
    %v999 = vpop.permute.xlu0 %998
    %1002 = vset.pattern.permute.xlu0 0
    %1003 = vperm.xlu0 %1002, %v929
    %v1004 = vpop.permute.xlu0 %1003
    %1007 = vset.pattern.permute.xlu0 0
    %1008 = vperm.xlu0 %1007, %v930
    %v1009 = vpop.permute.xlu0 %1008
    %1012 = vset.pattern.permute.xlu0 0
    %1013 = vperm.xlu0 %1012, %v931
    %v1014 = vpop.permute.xlu0 %1013
    %1017 = vset.pattern.permute.xlu0 0
    %1018 = vperm.xlu0 %1017, %v932
    %v1019 = vpop.permute.xlu0 %1018
    %1022 = vset.pattern.permute.xlu0 0
    %1023 = vperm.xlu0 %1022, %v933
    %v1024 = vpop.permute.xlu0 %1023
    %1027 = vset.pattern.permute.xlu0 0
    %1028 = vperm.xlu0 %1027, %v934
    %v1029 = vpop.permute.xlu0 %1028
    %1032 = vset.pattern.permute.xlu0 0
    %1033 = vperm.xlu0 %1032, %v935
    %v1034 = vpop.permute.xlu0 %1033
    %1037 = vset.pattern.permute.xlu0 0
    %1038 = vperm.xlu0 %1037, %v936
    %v1039 = vpop.permute.xlu0 %1038
    %1042 = vset.pattern.permute.xlu0 0
    %1043 = vperm.xlu0 %1042, %v937
    %v1044 = vpop.permute.xlu0 %1043
    %1047 = vset.pattern.permute.xlu0 0
    %1048 = vperm.xlu0 %1047, %v938
    %v1049 = vpop.permute.xlu0 %1048
    %1052 = vset.pattern.permute.xlu0 0
    %1053 = vperm.xlu0 %1052, %v939
    %v1054 = vpop.permute.xlu0 %1053
    %1057 = vset.pattern.permute.xlu0 0
    %1058 = vperm.xlu0 %1057, %v940
    %v1059 = vpop.permute.xlu0 %1058
    %1062 = vset.pattern.permute.xlu0 0
    %1063 = vperm.xlu0 %1062, %v941
    %v1064 = vpop.permute.xlu0 %1063
    %1067 = vset.pattern.permute.xlu0 0
    %1068 = vperm.xlu0 %1067, %v942
    %v1069 = vpop.permute.xlu0 %1068
    %1072 = vset.pattern.permute.xlu0 0
    %1073 = vperm.xlu0 %1072, %v943
    %v1074 = vpop.permute.xlu0 %1073
    %1077 = vset.pattern.permute.xlu0 0
    %1078 = vperm.xlu0 %1077, %v944
    %v1079 = vpop.permute.xlu0 %1078
    %1082 = vset.pattern.permute.xlu0 0
    %1083 = vperm.xlu0 %1082, %v945
    %v1084 = vpop.permute.xlu0 %1083
    %1087 = vset.pattern.permute.xlu0 0
    %1088 = vperm.xlu0 %1087, %v946
    %v1089 = vpop.permute.xlu0 %1088
    %1092 = vset.pattern.permute.xlu0 0
    %1093 = vperm.xlu0 %1092, %v947
    %v1094 = vpop.permute.xlu0 %1093
    %1097 = vset.pattern.permute.xlu0 0
    %1098 = vperm.xlu0 %1097, %v948
    %v1099 = vpop.permute.xlu0 %1098
    %1102 = vset.pattern.permute.xlu0 0
    %1103 = vperm.xlu0 %1102, %v949
    %v1104 = vpop.permute.xlu0 %1103
    %1107 = vset.pattern.permute.xlu0 0
    %1108 = vperm.xlu0 %1107, %v950
    %v1109 = vpop.permute.xlu0 %1108
    %v1112 = vsel %vm517, %v887, 0
    %v1115 = vsel %vm517, %v888, 0
    %v1118 = vsel %vm517, %v889, 0
    %v1121 = vsel %vm517, %v890, 0
    %v1124 = vsel %vm517, %v891, 0
    %v1127 = vsel %vm517, %v892, 0
    %v1130 = vsel %vm517, %v893, 0
    %v1133 = vsel %vm517, %v894, 0
    %v1136 = vsel %vm517, %v895, 0
    %v1139 = vsel %vm517, %v896, 0
    %v1142 = vsel %vm517, %v897, 0
    %v1145 = vsel %vm517, %v898, 0
    %v1148 = vsel %vm517, %v899, 0
    %v1151 = vsel %vm517, %v900, 0
    %v1154 = vsel %vm517, %v901, 0
    %v1157 = vsel %vm517, %v902, 0
    %v1160 = vsel %vm517, %v903, 0
    %v1163 = vsel %vm517, %v904, 0
    %v1166 = vsel %vm517, %v905, 0
    %v1169 = vsel %vm517, %v906, 0
    %v1172 = vsel %vm517, %v907, 0
    %v1175 = vsel %vm517, %v908, 0
    %v1178 = vsel %vm517, %v909, 0
    %v1181 = vsel %vm517, %v910, 0
    %v1184 = vsel %vm517, %v911, 0
    %v1187 = vsel %vm517, %v912, 0
    %v1190 = vsel %vm517, %v913, 0
    %v1193 = vsel %vm517, %v914, 0
    %v1196 = vsel %vm517, %v915, 0
    %v1199 = vsel %vm517, %v916, 0
    %v1202 = vsel %vm517, %v917, 0
    %v1205 = vsel %vm517, %v918, 0
    %1207 = vmatprep.subr.mxu0 0.0
    %1208 = vmatpush1.msra.mxu0 %v285
    %1209 = vmatprep.subr.mxu0 0.0
    %1210 = vmatpush1.msra.mxu0 %v286
    %1211 = vmatprep.subr.mxu0 0.0
    %1212 = vmatpush1.msra.mxu0 %v287
    %1213 = vmatprep.subr.mxu0 0.0
    %1214 = vmatpush1.msra.mxu0 %v288
    %1215 = vmatprep.subr.mxu0 0.0
    %1216 = vmatpush1.msra.mxu0 %v289
    %1217 = vmatprep.subr.mxu0 0.0
    %1218 = vmatpush1.msra.mxu0 %v290
    %1219 = vmatprep.subr.mxu0 0.0
    %1220 = vmatpush1.msra.mxu0 %v291
    %1221 = vmatprep.subr.mxu0 0.0
    %1222 = vmatpush1.msra.mxu0 %v292
    %1223 = vmatprep.subr.mxu0 0.0
    %1224 = vmatpush1.msra.mxu0 0.0
    %1225 = vmatprep.subr.mxu0 0.0
    %1226 = vmatpush1.msra.mxu0 0.0
    %1227 = vmatprep.subr.mxu0 0.0
    %1228 = vmatpush1.msra.mxu0 0.0
    %1229 = vmatprep.subr.mxu0 0.0
    %1230 = vmatpush1.msra.mxu0 0.0
    %1231 = vmatprep.subr.mxu0 0.0
    %1232 = vmatpush1.msra.mxu0 0.0
    %1233 = vmatprep.subr.mxu0 0.0
    %1234 = vmatpush1.msra.mxu0 0.0
    %1235 = vmatprep.subr.mxu0 0.0
    %1236 = vmatpush1.msra.mxu0 0.0
    %1237 = vmatprep.subr.mxu0 0.0
    %1238 = vmatpush1.msra.mxu0 0.0
    %1239 = vmatprep.subr.mxu0 0.0
    %1240 = vmatpush1.msra.mxu0 0.0
    %1241 = vmatprep.subr.mxu0 0.0
    %1242 = vmatpush1.msra.mxu0 0.0
    %1243 = vmatprep.subr.mxu0 0.0
    %1244 = vmatpush1.msra.mxu0 0.0
    %1245 = vmatprep.subr.mxu0 0.0
    %1246 = vmatpush1.msra.mxu0 0.0
    %1247 = vmatprep.subr.mxu0 0.0
    %1248 = vmatpush1.msra.mxu0 0.0
    %1249 = vmatprep.subr.mxu0 0.0
    %1250 = vmatpush1.msra.mxu0 0.0
    %1251 = vmatprep.subr.mxu0 0.0
    %1252 = vmatpush1.msra.mxu0 0.0
    %1253 = vmatprep.subr.mxu0 0.0
    %1254 = vmatpush1.msra.mxu0 0.0
    %1255 = vmatprep.subr.mxu0 0.0
    %1256 = vmatpush1.msra.mxu0 0.0
    %1257 = vmatprep.subr.mxu0 0.0
    %1258 = vmatpush1.msra.mxu0 0.0
    %1259 = vmatprep.subr.mxu0 0.0
    %1260 = vmatpush1.msra.mxu0 0.0
    %1261 = vmatprep.subr.mxu0 0.0
    %1262 = vmatpush1.msra.mxu0 0.0
    %1263 = vmatprep.subr.mxu0 0.0
    %1264 = vmatpush1.msra.mxu0 0.0
    %1265 = vmatprep.subr.mxu0 0.0
    %1266 = vmatpush1.msra.mxu0 0.0
    %1267 = vmatprep.subr.mxu0 0.0
    %1268 = vmatpush1.msra.mxu0 0.0
    %1269 = vmatprep.subr.mxu0 0.0
    %1270 = vmatpush1.msra.mxu0 0.0
    %1271 = vmatprep.mubr.f32.mxu0 0.0
    %1272 = vmatmul.mubr.f32.gmra.mrb[0].mxu0 %v1112
    %v1273 = vpop.f32.mrb[0].mxu0
    %v1274 = vadd.f32 %v954, %v1273
    %v1275 = vpop.f32.mrb[0].mxu0
    %1276 = vmatprep.mubr.f32.mxu0 0.0
    %1277 = vmatmul.mubr.f32.gmra.mrb[0].mxu0 %v1115
    %v1278 = vpop.f32.mrb[0].mxu0
    %v1279 = vadd.f32 %v959, %v1278
    %v1280 = vpop.f32.mrb[0].mxu0
    %1281 = vmatprep.mubr.f32.mxu0 0.0
    %1282 = vmatmul.mubr.f32.gmra.mrb[0].mxu0 %v1118
    %v1283 = vpop.f32.mrb[0].mxu0
    %v1284 = vadd.f32 %v964, %v1283
    %v1285 = vpop.f32.mrb[0].mxu0
    %1286 = vmatprep.mubr.f32.mxu0 0.0
    %1287 = vmatmul.mubr.f32.gmra.mrb[0].mxu0 %v1121
    %v1288 = vpop.f32.mrb[0].mxu0
    %v1289 = vadd.f32 %v969, %v1288
    %v1290 = vpop.f32.mrb[0].mxu0
    %1291 = vmatprep.mubr.f32.mxu0 0.0
    %1292 = vmatmul.mubr.f32.gmra.mrb[0].mxu0 %v1124
    %v1293 = vpop.f32.mrb[0].mxu0
    %v1294 = vadd.f32 %v974, %v1293
    %v1295 = vpop.f32.mrb[0].mxu0
    %1296 = vmatprep.mubr.f32.mxu0 0.0
    %1297 = vmatmul.mubr.f32.gmra.mrb[0].mxu0 %v1127
    %v1298 = vpop.f32.mrb[0].mxu0
    %v1299 = vadd.f32 %v979, %v1298
    %v1300 = vpop.f32.mrb[0].mxu0
    %1301 = vmatprep.mubr.f32.mxu0 0.0
    %1302 = vmatmul.mubr.f32.gmra.mrb[0].mxu0 %v1130
    %v1303 = vpop.f32.mrb[0].mxu0
    %v1304 = vadd.f32 %v984, %v1303
    %v1305 = vpop.f32.mrb[0].mxu0
    %1306 = vmatprep.mubr.f32.mxu0 0.0
    %1307 = vmatmul.mubr.f32.gmra.mrb[0].mxu0 %v1133
    %v1308 = vpop.f32.mrb[0].mxu0
    %v1309 = vadd.f32 %v989, %v1308
    %v1310 = vpop.f32.mrb[0].mxu0
    %1311 = vmatprep.mubr.f32.mxu0 0.0
    %1312 = vmatmul.mubr.f32.gmra.mrb[0].mxu0 %v1136
    %v1313 = vpop.f32.mrb[0].mxu0
    %v1314 = vadd.f32 %v994, %v1313
    %v1315 = vpop.f32.mrb[0].mxu0
    %1316 = vmatprep.mubr.f32.mxu0 0.0
    %1317 = vmatmul.mubr.f32.gmra.mrb[0].mxu0 %v1139
    %v1318 = vpop.f32.mrb[0].mxu0
    %v1319 = vadd.f32 %v999, %v1318
    %v1320 = vpop.f32.mrb[0].mxu0
    %1321 = vmatprep.mubr.f32.mxu0 0.0
    %1322 = vmatmul.mubr.f32.gmra.mrb[0].mxu0 %v1142
    %v1323 = vpop.f32.mrb[0].mxu0
    %v1324 = vadd.f32 %v1004, %v1323
    %v1325 = vpop.f32.mrb[0].mxu0
    %1326 = vmatprep.mubr.f32.mxu0 0.0
    %1327 = vmatmul.mubr.f32.gmra.mrb[0].mxu0 %v1145
    %v1328 = vpop.f32.mrb[0].mxu0
    %v1329 = vadd.f32 %v1009, %v1328
    %v1330 = vpop.f32.mrb[0].mxu0
    %1331 = vmatprep.mubr.f32.mxu0 0.0
    %1332 = vmatmul.mubr.f32.gmra.mrb[0].mxu0 %v1148
    %v1333 = vpop.f32.mrb[0].mxu0
    %v1334 = vadd.f32 %v1014, %v1333
    %v1335 = vpop.f32.mrb[0].mxu0
    %1336 = vmatprep.mubr.f32.mxu0 0.0
    %1337 = vmatmul.mubr.f32.gmra.mrb[0].mxu0 %v1151
    %v1338 = vpop.f32.mrb[0].mxu0
    %v1339 = vadd.f32 %v1019, %v1338
    %v1340 = vpop.f32.mrb[0].mxu0
    %1341 = vmatprep.mubr.f32.mxu0 0.0
    %1342 = vmatmul.mubr.f32.gmra.mrb[0].mxu0 %v1154
    %v1343 = vpop.f32.mrb[0].mxu0
    %v1344 = vadd.f32 %v1024, %v1343
    %v1345 = vpop.f32.mrb[0].mxu0
    %1346 = vmatprep.mubr.f32.mxu0 0.0
    %1347 = vmatmul.mubr.f32.gmra.mrb[0].mxu0 %v1157
    %v1348 = vpop.f32.mrb[0].mxu0
    %v1349 = vadd.f32 %v1029, %v1348
    %v1350 = vpop.f32.mrb[0].mxu0
    %1351 = vmatprep.mubr.f32.mxu0 0.0
    %1352 = vmatmul.mubr.f32.gmra.mrb[0].mxu0 %v1160
    %v1353 = vpop.f32.mrb[0].mxu0
    %v1354 = vadd.f32 %v1034, %v1353
    %v1355 = vpop.f32.mrb[0].mxu0
    %1356 = vmatprep.mubr.f32.mxu0 0.0
    %1357 = vmatmul.mubr.f32.gmra.mrb[0].mxu0 %v1163
    %v1358 = vpop.f32.mrb[0].mxu0
    %v1359 = vadd.f32 %v1039, %v1358
    %v1360 = vpop.f32.mrb[0].mxu0
    %1361 = vmatprep.mubr.f32.mxu0 0.0
    %1362 = vmatmul.mubr.f32.gmra.mrb[0].mxu0 %v1166
    %v1363 = vpop.f32.mrb[0].mxu0
    %v1364 = vadd.f32 %v1044, %v1363
    %v1365 = vpop.f32.mrb[0].mxu0
    %1366 = vmatprep.mubr.f32.mxu0 0.0
    %1367 = vmatmul.mubr.f32.gmra.mrb[0].mxu0 %v1169
    %v1368 = vpop.f32.mrb[0].mxu0
    %v1369 = vadd.f32 %v1049, %v1368
    %v1370 = vpop.f32.mrb[0].mxu0
    %1371 = vmatprep.mubr.f32.mxu0 0.0
    %1372 = vmatmul.mubr.f32.gmra.mrb[0].mxu0 %v1172
    %v1373 = vpop.f32.mrb[0].mxu0
    %v1374 = vadd.f32 %v1054, %v1373
    %v1375 = vpop.f32.mrb[0].mxu0
    %1376 = vmatprep.mubr.f32.mxu0 0.0
    %1377 = vmatmul.mubr.f32.gmra.mrb[0].mxu0 %v1175
    %v1378 = vpop.f32.mrb[0].mxu0
    %v1379 = vadd.f32 %v1059, %v1378
    %v1380 = vpop.f32.mrb[0].mxu0
    %1381 = vmatprep.mubr.f32.mxu0 0.0
    %1382 = vmatmul.mubr.f32.gmra.mrb[0].mxu0 %v1178
    %v1383 = vpop.f32.mrb[0].mxu0
    %v1384 = vadd.f32 %v1064, %v1383
    %v1385 = vpop.f32.mrb[0].mxu0
    %1386 = vmatprep.mubr.f32.mxu0 0.0
    %1387 = vmatmul.mubr.f32.gmra.mrb[0].mxu0 %v1181
    %v1388 = vpop.f32.mrb[0].mxu0
    %v1389 = vadd.f32 %v1069, %v1388
    %v1390 = vpop.f32.mrb[0].mxu0
    %1391 = vmatprep.mubr.f32.mxu0 0.0
    %1392 = vmatmul.mubr.f32.gmra.mrb[0].mxu0 %v1184
    %v1393 = vpop.f32.mrb[0].mxu0
    %v1394 = vadd.f32 %v1074, %v1393
    %v1395 = vpop.f32.mrb[0].mxu0
    %1396 = vmatprep.mubr.f32.mxu0 0.0
    %1397 = vmatmul.mubr.f32.gmra.mrb[0].mxu0 %v1187
    %v1398 = vpop.f32.mrb[0].mxu0
    %v1399 = vadd.f32 %v1079, %v1398
    %v1400 = vpop.f32.mrb[0].mxu0
    %1401 = vmatprep.mubr.f32.mxu0 0.0
    %1402 = vmatmul.mubr.f32.gmra.mrb[0].mxu0 %v1190
    %v1403 = vpop.f32.mrb[0].mxu0
    %v1404 = vadd.f32 %v1084, %v1403
    %v1405 = vpop.f32.mrb[0].mxu0
    %1406 = vmatprep.mubr.f32.mxu0 0.0
    %1407 = vmatmul.mubr.f32.gmra.mrb[0].mxu0 %v1193
    %v1408 = vpop.f32.mrb[0].mxu0
    %v1409 = vadd.f32 %v1089, %v1408
    %v1410 = vpop.f32.mrb[0].mxu0
    %1411 = vmatprep.mubr.f32.mxu0 0.0
    %1412 = vmatmul.mubr.f32.gmra.mrb[0].mxu0 %v1196
    %v1413 = vpop.f32.mrb[0].mxu0
    %v1414 = vadd.f32 %v1094, %v1413
    %v1415 = vpop.f32.mrb[0].mxu0
    %1416 = vmatprep.mubr.f32.mxu0 0.0
    %1417 = vmatmul.mubr.f32.gmra.mrb[0].mxu0 %v1199
    %v1418 = vpop.f32.mrb[0].mxu0
    %v1419 = vadd.f32 %v1099, %v1418
    %v1420 = vpop.f32.mrb[0].mxu0
    %1421 = vmatprep.mubr.f32.mxu0 0.0
    %1422 = vmatmul.mubr.f32.gmra.mrb[0].mxu0 %v1202
    %v1423 = vpop.f32.mrb[0].mxu0
    %v1424 = vadd.f32 %v1104, %v1423
    %v1425 = vpop.f32.mrb[0].mxu0
    %1426 = vmatprep.mubr.f32.mxu0 0.0
    %1427 = vmatmul.mubr.f32.gmra.mrb[0].mxu0 %v1205
    %v1428 = vpop.f32.mrb[0].mxu0
    %v1429 = vadd.f32 %v1109, %v1428
    %v1430 = vpop.f32.mrb[0].mxu0
    %1431 = vdwg.mxu0
    %v1432 = vmax.f32 %v1274, 0.0
    %v1433 = vmax.f32 %v1279, 0.0
    %v1434 = vmax.f32 %v1284, 0.0
    %v1435 = vmax.f32 %v1289, 0.0
    %v1436 = vmax.f32 %v1294, 0.0
    %v1437 = vmax.f32 %v1299, 0.0
    %v1438 = vmax.f32 %v1304, 0.0
    %v1439 = vmax.f32 %v1309, 0.0
    %v1440 = vmax.f32 %v1314, 0.0
    %v1441 = vmax.f32 %v1319, 0.0
    %v1442 = vmax.f32 %v1324, 0.0
    %v1443 = vmax.f32 %v1329, 0.0
    %v1444 = vmax.f32 %v1334, 0.0
    %v1445 = vmax.f32 %v1339, 0.0
    %v1446 = vmax.f32 %v1344, 0.0
    %v1447 = vmax.f32 %v1349, 0.0
    %v1448 = vmax.f32 %v1354, 0.0
    %v1449 = vmax.f32 %v1359, 0.0
    %v1450 = vmax.f32 %v1364, 0.0
    %v1451 = vmax.f32 %v1369, 0.0
    %v1452 = vmax.f32 %v1374, 0.0
    %v1453 = vmax.f32 %v1379, 0.0
    %v1454 = vmax.f32 %v1384, 0.0
    %v1455 = vmax.f32 %v1389, 0.0
    %v1456 = vmax.f32 %v1394, 0.0
    %v1457 = vmax.f32 %v1399, 0.0
    %v1458 = vmax.f32 %v1404, 0.0
    %v1459 = vmax.f32 %v1409, 0.0
    %v1460 = vmax.f32 %v1414, 0.0
    %v1461 = vmax.f32 %v1419, 0.0
    %v1462 = vmax.f32 %v1424, 0.0
    %v1463 = vmax.f32 %v1429, 0.0
    %v1464 = vld [vmem:[%s5 + $0x10] sm:$0xff]
    %v1465 = vld [vmem:[%s5 + $0x18] sm:$0xff]
    %v1466 = vld [vmem:[%s5 + $0x30] sm:$0xff]
    %v1467 = vld [vmem:[%s5 + $0x38] sm:$0xff]
    %v1468 = vld [vmem:[%s5 + $0x50] sm:$0xff]
    %v1469 = vld [vmem:[%s5 + $0x58] sm:$0xff]
    %v1470 = vld [vmem:[%s5 + $0x70] sm:$0xff]
    %v1471 = vld [vmem:[%s5 + $0x78] sm:$0xff]
    %v1472 = vld [vmem:[%s5 + $0x90] sm:$0xff]
    %v1473 = vld [vmem:[%s5 + $0x98] sm:$0xff]
    %v1474 = vld [vmem:[%s5 + $0xb0] sm:$0xff]
    %v1475 = vld [vmem:[%s5 + $0xb8] sm:$0xff]
    %v1476 = vld [vmem:[%s5 + $0xd0] sm:$0xff]
    %v1477 = vld [vmem:[%s5 + $0xd8] sm:$0xff]
    %v1478 = vld [vmem:[%s5 + $0xf0] sm:$0xff]
    %v1479 = vld [vmem:[%s5 + $0xf8] sm:$0xff]
    %1480 = vmatprep.subr.mxu0 0.0
    %1481 = vmatpush1.msra.mxu0 %v1432
    %1482 = vmatprep.subr.mxu0 0.0
    %1483 = vmatpush1.msra.mxu0 %v1433
    %1484 = vmatprep.subr.mxu0 0.0
    %1485 = vmatpush1.msra.mxu0 %v1434
    %1486 = vmatprep.subr.mxu0 0.0
    %1487 = vmatpush1.msra.mxu0 %v1435
    %1488 = vmatprep.subr.mxu0 0.0
    %1489 = vmatpush1.msra.mxu0 %v1436
    %1490 = vmatprep.subr.mxu0 0.0
    %1491 = vmatpush1.msra.mxu0 %v1437
    %1492 = vmatprep.subr.mxu0 0.0
    %1493 = vmatpush1.msra.mxu0 %v1438
    %1494 = vmatprep.subr.mxu0 0.0
    %1495 = vmatpush1.msra.mxu0 %v1439
    %1496 = vmatprep.subr.mxu0 0.0
    %1497 = vmatpush1.msra.mxu0 %v1440
    %1498 = vmatprep.subr.mxu0 0.0
    %1499 = vmatpush1.msra.mxu0 %v1441
    %1500 = vmatprep.subr.mxu0 0.0
    %1501 = vmatpush1.msra.mxu0 %v1442
    %1502 = vmatprep.subr.mxu0 0.0
    %1503 = vmatpush1.msra.mxu0 %v1443
    %1504 = vmatprep.subr.mxu0 0.0
    %1505 = vmatpush1.msra.mxu0 %v1444
    %1506 = vmatprep.subr.mxu0 0.0
    %1507 = vmatpush1.msra.mxu0 %v1445
    %1508 = vmatprep.subr.mxu0 0.0
    %1509 = vmatpush1.msra.mxu0 %v1446
    %1510 = vmatprep.subr.mxu0 0.0
    %1511 = vmatpush1.msra.mxu0 %v1447
    %1512 = vmatprep.subr.mxu0 0.0
    %1513 = vmatpush1.msra.mxu0 %v1448
    %1514 = vmatprep.subr.mxu0 0.0
    %1515 = vmatpush1.msra.mxu0 %v1449
    %1516 = vmatprep.subr.mxu0 0.0
    %1517 = vmatpush1.msra.mxu0 %v1450
    %1518 = vmatprep.subr.mxu0 0.0
    %1519 = vmatpush1.msra.mxu0 %v1451
    %1520 = vmatprep.subr.mxu0 0.0
    %1521 = vmatpush1.msra.mxu0 %v1452
    %1522 = vmatprep.subr.mxu0 0.0
    %1523 = vmatpush1.msra.mxu0 %v1453
    %1524 = vmatprep.subr.mxu0 0.0
    %1525 = vmatpush1.msra.mxu0 %v1454
    %1526 = vmatprep.subr.mxu0 0.0
    %1527 = vmatpush1.msra.mxu0 %v1455
    %1528 = vmatprep.subr.mxu0 0.0
    %1529 = vmatpush1.msra.mxu0 %v1456
    %1530 = vmatprep.subr.mxu0 0.0
    %1531 = vmatpush1.msra.mxu0 %v1457
    %1532 = vmatprep.subr.mxu0 0.0
    %1533 = vmatpush1.msra.mxu0 %v1458
    %1534 = vmatprep.subr.mxu0 0.0
    %1535 = vmatpush1.msra.mxu0 %v1459
    %1536 = vmatprep.subr.mxu0 0.0
    %1537 = vmatpush1.msra.mxu0 %v1460
    %1538 = vmatprep.subr.mxu0 0.0
    %1539 = vmatpush1.msra.mxu0 %v1461
    %1540 = vmatprep.subr.mxu0 0.0
    %1541 = vmatpush1.msra.mxu0 %v1462
    %1542 = vmatprep.subr.mxu0 0.0
    %1543 = vmatpush1.msra.mxu0 %v1463
    %1544 = vmatprep.mubr.f32.mxu0 %v1465
    %1545 = vmatmul.mubr.f32.gmra.mrb[0].mxu0 %v1464
    %v1546 = vpop.f32.mrb[0].mxu0
    %v1547 = vadd.f32 0.0, %v1546
    %v1548 = vpop.f32.mrb[0].mxu0
    %1549 = vmatprep.mubr.f32.mxu0 %v1467
    %1550 = vmatmul.mubr.f32.gmra.mrb[0].mxu0 %v1466
    %v1551 = vpop.f32.mrb[0].mxu0
    %v1552 = vadd.f32 0.0, %v1551
    %v1553 = vpop.f32.mrb[0].mxu0
    %1554 = vmatprep.mubr.f32.mxu0 %v1469
    %1555 = vmatmul.mubr.f32.gmra.mrb[0].mxu0 %v1468
    %v1556 = vpop.f32.mrb[0].mxu0
    %v1557 = vadd.f32 0.0, %v1556
    %v1558 = vpop.f32.mrb[0].mxu0
    %1559 = vmatprep.mubr.f32.mxu0 %v1471
    %1560 = vmatmul.mubr.f32.gmra.mrb[0].mxu0 %v1470
    %v1561 = vpop.f32.mrb[0].mxu0
    %v1562 = vadd.f32 0.0, %v1561
    %v1563 = vpop.f32.mrb[0].mxu0
    %1564 = vmatprep.mubr.f32.mxu0 %v1473
    %1565 = vmatmul.mubr.f32.gmra.mrb[0].mxu0 %v1472
    %v1566 = vpop.f32.mrb[0].mxu0
    %v1567 = vadd.f32 0.0, %v1566
    %v1568 = vpop.f32.mrb[0].mxu0
    %1569 = vmatprep.mubr.f32.mxu0 %v1475
    %1570 = vmatmul.mubr.f32.gmra.mrb[0].mxu0 %v1474
    %v1571 = vpop.f32.mrb[0].mxu0
    %v1572 = vadd.f32 0.0, %v1571
    %v1573 = vpop.f32.mrb[0].mxu0
    %1574 = vmatprep.mubr.f32.mxu0 %v1477
    %1575 = vmatmul.mubr.f32.gmra.mrb[0].mxu0 %v1476
    %v1576 = vpop.f32.mrb[0].mxu0
    %v1577 = vadd.f32 0.0, %v1576
    %v1578 = vpop.f32.mrb[0].mxu0
    %1579 = vmatprep.mubr.f32.mxu0 %v1479
    %1580 = vmatmul.mubr.f32.gmra.mrb[0].mxu0 %v1478
    %v1581 = vpop.f32.mrb[0].mxu0
    %v1582 = vadd.f32 0.0, %v1581
    %v1583 = vpop.f32.mrb[0].mxu0
    %1584 = vdwg.mxu0
    %1585 = vmatprep.subr.mxu0 0.0
    %1586 = vmatpush1.msra.mxu0 %v839
    %1587 = vmatprep.subr.mxu0 0.0
    %1588 = vmatpush1.msra.mxu0 %v840
    %1589 = vmatprep.subr.mxu0 0.0
    %1590 = vmatpush1.msra.mxu0 %v841
    %1591 = vmatprep.subr.mxu0 0.0
    %1592 = vmatpush1.msra.mxu0 %v842
    %1593 = vmatprep.subr.mxu0 0.0
    %1594 = vmatpush1.msra.mxu0 %v843
    %1595 = vmatprep.subr.mxu0 0.0
    %1596 = vmatpush1.msra.mxu0 %v844
    %1597 = vmatprep.subr.mxu0 0.0
    %1598 = vmatpush1.msra.mxu0 %v845
    %1599 = vmatprep.subr.mxu0 0.0
    %1600 = vmatpush1.msra.mxu0 %v846
    %1601 = vmatprep.subr.mxu0 0.0
    %1602 = vmatpush1.msra.mxu0 %v847
    %1603 = vmatprep.subr.mxu0 0.0
    %1604 = vmatpush1.msra.mxu0 %v848
    %1605 = vmatprep.subr.mxu0 0.0
    %1606 = vmatpush1.msra.mxu0 %v849
    %1607 = vmatprep.subr.mxu0 0.0
    %1608 = vmatpush1.msra.mxu0 %v850
    %1609 = vmatprep.subr.mxu0 0.0
    %1610 = vmatpush1.msra.mxu0 %v851
    %1611 = vmatprep.subr.mxu0 0.0
    %1612 = vmatpush1.msra.mxu0 %v852
    %1613 = vmatprep.subr.mxu0 0.0
    %1614 = vmatpush1.msra.mxu0 %v853
    %1615 = vmatprep.subr.mxu0 0.0
    %1616 = vmatpush1.msra.mxu0 %v854
    %1617 = vmatprep.subr.mxu0 0.0
    %1618 = vmatpush1.msra.mxu0 %v855
    %1619 = vmatprep.subr.mxu0 0.0
    %1620 = vmatpush1.msra.mxu0 %v856
    %1621 = vmatprep.subr.mxu0 0.0
    %1622 = vmatpush1.msra.mxu0 %v857
    %1623 = vmatprep.subr.mxu0 0.0
    %1624 = vmatpush1.msra.mxu0 %v858
    %1625 = vmatprep.subr.mxu0 0.0
    %1626 = vmatpush1.msra.mxu0 %v859
    %1627 = vmatprep.subr.mxu0 0.0
    %1628 = vmatpush1.msra.mxu0 %v860
    %1629 = vmatprep.subr.mxu0 0.0
    %1630 = vmatpush1.msra.mxu0 %v861
    %1631 = vmatprep.subr.mxu0 0.0
    %1632 = vmatpush1.msra.mxu0 %v862
    %1633 = vmatprep.subr.mxu0 0.0
    %1634 = vmatpush1.msra.mxu0 %v863
    %1635 = vmatprep.subr.mxu0 0.0
    %1636 = vmatpush1.msra.mxu0 %v864
    %1637 = vmatprep.subr.mxu0 0.0
    %1638 = vmatpush1.msra.mxu0 %v865
    %1639 = vmatprep.subr.mxu0 0.0
    %1640 = vmatpush1.msra.mxu0 %v866
    %1641 = vmatprep.subr.mxu0 0.0
    %1642 = vmatpush1.msra.mxu0 %v867
    %1643 = vmatprep.subr.mxu0 0.0
    %1644 = vmatpush1.msra.mxu0 %v868
    %1645 = vmatprep.subr.mxu0 0.0
    %1646 = vmatpush1.msra.mxu0 %v869
    %1647 = vmatprep.subr.mxu0 0.0
    %1648 = vmatpush1.msra.mxu0 %v870
    %1649 = vmatprep.mubr.f32.mxu0 %v872
    %1650 = vmatmul.mubr.f32.gmra.mrb[0].mxu0 %v871
    %v1651 = vpop.f32.mrb[0].mxu0
    %v1652 = vadd.f32 %v1547, %v1651
    %v1653 = vpop.f32.mrb[0].mxu0
    %1654 = vmatprep.mubr.f32.mxu0 %v874
    %1655 = vmatmul.mubr.f32.gmra.mrb[0].mxu0 %v873
    %v1656 = vpop.f32.mrb[0].mxu0
    %v1657 = vadd.f32 %v1552, %v1656
    %v1658 = vpop.f32.mrb[0].mxu0
    %1659 = vmatprep.mubr.f32.mxu0 %v876
    %1660 = vmatmul.mubr.f32.gmra.mrb[0].mxu0 %v875
    %v1661 = vpop.f32.mrb[0].mxu0
    %v1662 = vadd.f32 %v1557, %v1661
    %v1663 = vpop.f32.mrb[0].mxu0
    %1664 = vmatprep.mubr.f32.mxu0 %v878
    %1665 = vmatmul.mubr.f32.gmra.mrb[0].mxu0 %v877
    %v1666 = vpop.f32.mrb[0].mxu0
    %v1667 = vadd.f32 %v1562, %v1666
    %v1668 = vpop.f32.mrb[0].mxu0
    %1669 = vmatprep.mubr.f32.mxu0 %v880
    %1670 = vmatmul.mubr.f32.gmra.mrb[0].mxu0 %v879
    %v1671 = vpop.f32.mrb[0].mxu0
    %v1672 = vadd.f32 %v1567, %v1671
    %v1673 = vpop.f32.mrb[0].mxu0
    %1674 = vmatprep.mubr.f32.mxu0 %v882
    %1675 = vmatmul.mubr.f32.gmra.mrb[0].mxu0 %v881
    %v1676 = vpop.f32.mrb[0].mxu0
    %v1677 = vadd.f32 %v1572, %v1676
    %v1678 = vpop.f32.mrb[0].mxu0
    %1679 = vmatprep.mubr.f32.mxu0 %v884
    %1680 = vmatmul.mubr.f32.gmra.mrb[0].mxu0 %v883
    %v1681 = vpop.f32.mrb[0].mxu0
    %v1682 = vadd.f32 %v1577, %v1681
    %v1683 = vpop.f32.mrb[0].mxu0
    %1684 = vmatprep.mubr.f32.mxu0 %v886
    %1685 = vmatmul.mubr.f32.gmra.mrb[0].mxu0 %v885
    %v1686 = vpop.f32.mrb[0].mxu0
    %v1687 = vadd.f32 %v1582, %v1686
    %v1688 = vpop.f32.mrb[0].mxu0
    %1689 = vdwg.mxu0
    %v1690 = vld [vmem:[%s6] sm:$0xff]
    %v1691 = vld [vmem:[%s6 + $0x8] sm:$0xff]
    %v1692 = vld [vmem:[%s6 + $0x10] sm:$0xff]
    %v1693 = vld [vmem:[%s6 + $0x18] sm:$0xff]
    %v1694 = vld [vmem:[%s6 + $0x20] sm:$0xff]
    %v1695 = vld [vmem:[%s6 + $0x28] sm:$0xff]
    %v1696 = vld [vmem:[%s6 + $0x30] sm:$0xff]
    %v1697 = vld [vmem:[%s6 + $0x38] sm:$0xff]
    %1699 = vset.pattern.permute.xlu0 0
    %1700 = vperm.xlu0 %1699, %v1690
    %v1701 = vpop.permute.xlu0 %1700
    %1704 = vset.pattern.permute.xlu0 0
    %1705 = vperm.xlu0 %1704, %v1691
    %v1706 = vpop.permute.xlu0 %1705
    %1709 = vset.pattern.permute.xlu0 0
    %1710 = vperm.xlu0 %1709, %v1692
    %v1711 = vpop.permute.xlu0 %1710
    %1714 = vset.pattern.permute.xlu0 0
    %1715 = vperm.xlu0 %1714, %v1693
    %v1716 = vpop.permute.xlu0 %1715
    %1719 = vset.pattern.permute.xlu0 0
    %1720 = vperm.xlu0 %1719, %v1694
    %v1721 = vpop.permute.xlu0 %1720
    %1724 = vset.pattern.permute.xlu0 0
    %1725 = vperm.xlu0 %1724, %v1695
    %v1726 = vpop.permute.xlu0 %1725
    %1729 = vset.pattern.permute.xlu0 0
    %1730 = vperm.xlu0 %1729, %v1696
    %v1731 = vpop.permute.xlu0 %1730
    %1734 = vset.pattern.permute.xlu0 0
    %1735 = vperm.xlu0 %1734, %v1697
    %v1736 = vpop.permute.xlu0 %1735
    %v1738 = vadd.f32 %v1652, %v1701
    %v1739 = vadd.f32 %v1657, %v1706
    %v1740 = vadd.f32 %v1662, %v1711
    %v1741 = vadd.f32 %v1667, %v1716
    %v1742 = vadd.f32 %v1672, %v1721
    %v1743 = vadd.f32 %v1677, %v1726
    %v1744 = vadd.f32 %v1682, %v1731
    %v1745 = vadd.f32 %v1687, %v1736
    %v1746 = vmax.f32 %v1738, 0.0
    %v1747 = vmax.f32 %v1739, 0.0
    %v1748 = vmax.f32 %v1740, 0.0
    %v1749 = vmax.f32 %v1741, 0.0
    %v1750 = vmax.f32 %v1742, 0.0
    %v1751 = vmax.f32 %v1743, 0.0
    %v1752 = vmax.f32 %v1744, 0.0
    %v1753 = vmax.f32 %v1745, 0.0
    %v1754 = vld [vmem:[%s7] sm:$0xff]
    %v1755 = vld [vmem:[%s7 + $0x8] sm:$0xff]
    %v1756 = vld [vmem:[%s7 + $0x10] sm:$0xff]
    %v1757 = vld [vmem:[%s7 + $0x18] sm:$0xff]
    %v1758 = vld [vmem:[%s7 + $0x20] sm:$0xff]
    %v1759 = vld [vmem:[%s7 + $0x28] sm:$0xff]
    %v1760 = vld [vmem:[%s7 + $0x30] sm:$0xff]
    %v1761 = vld [vmem:[%s7 + $0x38] sm:$0xff]
    %1763 = vset.pattern.permute.xlu0 0
    %1764 = vperm.xlu0 %1763, %v1754
    %v1765 = vpop.permute.xlu0 %1764
    %1768 = vset.pattern.permute.xlu0 0
    %1769 = vperm.xlu0 %1768, %v1755
    %v1770 = vpop.permute.xlu0 %1769
    %1773 = vset.pattern.permute.xlu0 0
    %1774 = vperm.xlu0 %1773, %v1756
    %v1775 = vpop.permute.xlu0 %1774
    %1778 = vset.pattern.permute.xlu0 0
    %1779 = vperm.xlu0 %1778, %v1757
    %v1780 = vpop.permute.xlu0 %1779
    %1783 = vset.pattern.permute.xlu0 0
    %1784 = vperm.xlu0 %1783, %v1758
    %v1785 = vpop.permute.xlu0 %1784
    %1788 = vset.pattern.permute.xlu0 0
    %1789 = vperm.xlu0 %1788, %v1759
    %v1790 = vpop.permute.xlu0 %1789
    %1793 = vset.pattern.permute.xlu0 0
    %1794 = vperm.xlu0 %1793, %v1760
    %v1795 = vpop.permute.xlu0 %1794
    %1798 = vset.pattern.permute.xlu0 0
    %1799 = vperm.xlu0 %1798, %v1761
    %v1800 = vpop.permute.xlu0 %1799
    %v1802 = vmul.f32 %v1746, %v1765
    %v1803 = vmul.f32 %v1747, %v1770
    %v1804 = vmul.f32 %v1748, %v1775
    %v1805 = vmul.f32 %v1749, %v1780
    %v1806 = vmul.f32 %v1750, %v1785
    %v1807 = vmul.f32 %v1751, %v1790
    %v1808 = vmul.f32 %v1752, %v1795
    %v1809 = vmul.f32 %v1753, %v1800
    %v1810 = vadd.f32 %v1802, %v1803
    %v1811 = vadd.f32 %v1810, %v1804
    %v1812 = vadd.f32 %v1811, %v1805
    %v1813 = vadd.f32 %v1812, %v1806
    %v1814 = vadd.f32 %v1813, %v1807
    %v1815 = vadd.f32 %v1814, %v1808
    %v1816 = vadd.f32 %v1815, %v1809
    %v1817 = vrot.slane %v1816, 4
    %v1818 = vadd.f32 %v1816, %v1817
    %v1819 = vrot.slane %v1818, 2
    %v1820 = vadd.f32 %v1818, %v1819
    %v1821 = vrot.slane %v1820, 1
    %v1822 = vadd.f32 %v1820, %v1821
    %v1823 = vld [vmem:[#allocation2] sm:$0x1]
    %1825 = vset.pattern.permute.xlu0 0
    %1826 = vperm.xlu0 %1825, %v1823
    %v1827 = vpop.permute.xlu0 %1826
    %v1829 = vlaneseq
    %v1830 = vshrl.u32 %v1829, 7
    %v1831 = vsub.s32 0, %v1830
    %v1832 = vrot.slane %v1827, %v1831
    %v1833 = vadd.f32 %v1822, %v1832
    %1834 = vst [vmem:[#allocation3] sm:$0x1] %v1833
    // Predicated region
    $region38: #{tpu_custom_call.1} parent=1 // pred_check
      _
    $region39: #{tpu_custom_call.1} parent=1 // pred_check_branch
      %1836 = sbr.rel (0) target = $region41
    $region40: #{tpu_custom_call.1} parent=1 // pred_region
      %s1838 = ssub.s32 16, 16
      %1839 = vsyncadd [#allocation4], %s1838
      %s1841 = sshll.u32 [#allocation3], 4
      %s1842 = int_to_ptr.vmem [resolvable:$true] %s1841
      %1844 = dma.vmem_to_hbm [thread:$0]  %s1842, 16, %s9, [#allocation4]
    $region41: #{tpu_custom_call.1} parent=1 // pred_fallthru
      _
    // Predicated region
    $region42: #{tpu_custom_call.1} parent=1 // pred_check
      _
    $region43: #{tpu_custom_call.1} parent=1 // pred_check_branch
      %1846 = sbr.rel (0) target = $region45
    $region44: #{tpu_custom_call.1} parent=1 // pred_region
      %1847 = dma.done [#allocation4], 16
    $region45: #{tpu_custom_call.1} parent=1 // pred_fallthru
      _
    %1848 = vsyncpa [#allocation4], 1

</llo_original>
